<compile_context>
chip_gen: v5e
topology: v5e:2x2
jax: 0.10.0
libtpu: 0.0.40
codegen_flags: <defaults>
</compile_context>

<pallas_src>
import jax
import jax.numpy as jnp
from jax import lax
from jax.experimental import pallas as pl
from jax.experimental.pallas import tpu as pltpu


def _mlp_kernel(x_ref, w1_ref, b1_ref, w2_ref, b2_ref, o_ref):
    # Hoist bias loads; broadcast along the lane axis happens once per step.
    b1 = b1_ref[...]            # (1, H)
    b2 = b2_ref[...]            # (1, O)

    # Layer 1: x (tb, F) contracted against W1 (H, F) on the F axis -> (tb, H).
    # This is the A @ B^T ("trans_b") MXU pattern; no operand transpose materialized.
    h = jnp.tanh(
        lax.dot_general(
            x_ref[...], w1_ref[...],
            dimension_numbers=(((1,), (1,)), ((), ())),
            preferred_element_type=jnp.float32,
        )
        + b1
    )

    # Layer 2: h (tb, H) contracted against W2 (O, H) on the H axis -> (tb, O).
    y = lax.dot_general(
        h, w2_ref[...],
        dimension_numbers=(((1,), (1,)), ((), ())),
        preferred_element_type=jnp.float32,
    ) + b2

    # relu then +0.001, stored directly in natural (batch, out) layout.
    o_ref[...] = jnp.maximum(y, 0.0) + 0.001


# Single-tile threshold: x tile = MAX_TILE*F*4 bytes (1 MiB at F=16) — well past the
# ~85% HBM-roofline tile size, so there is nothing for a multi-step grid to hide.
MAX_TILE = 16384


def two_layer_regression_forward(x, W1, b1, W2, b2):
    """Forward pass of TwoLayerRegressionModel.

    x : (B, F) float32
    W1: (H, F), b1: (H,)   -- PyTorch nn.Linear layout
    W2: (O, H), b2: (O,)
    returns (B, O) float32 == relu(tanh(x @ W1.T + b1) @ W2.T + b2) + 0.001
    """
    B, F = x.shape
    H = W1.shape[0]
    O = W2.shape[0]

    x = jnp.asarray(x, jnp.float32)                     # natural (B, F) layout
    w1 = jnp.asarray(W1, jnp.float32)                   # (H, F), resident in VMEM
    w2 = jnp.asarray(W2, jnp.float32)                   # (O, H), resident in VMEM
    b1r = jnp.asarray(b1, jnp.float32).reshape(1, H)    # row vectors: broadcast on
    b2r = jnp.asarray(b2, jnp.float32).reshape(1, O)    # the last (lane) axis

    if B <= MAX_TILE:
        # Fast path: one grid step, no padding, no wrapper reshuffles.
        tb, n_tiles, Bp = B, 1, B
        x_in = x
    else:
        # Large-batch path: tile the batch axis; pad only if B is ragged w.r.t. tb.
        tb = MAX_TILE                                   # multiple of 8 and 128
        n_tiles = pl.cdiv(B, tb)
        Bp = n_tiles * tb
        x_in = jnp.pad(x, ((0, Bp - B), (0, 0))) if Bp != B else x

    # Advisory cost so XLA can overlap this tiny custom call with its neighbours.
    cost = pl.CostEstimate(
        flops=2 * Bp * (F * H + H * O),
        transcendentals=Bp * H,
        bytes_accessed=4 * (Bp * F + Bp * O + H * F + O * H + H + O),
    )

    # VMEM: double-buffered x / out tiles + hidden activation + resident weights.
    # Cap at 48 MiB so large tiles never claim the entire 64 MiB v7x VMEM.
    need = 4 * (2 * tb * (F + O) + tb * H + 2 * (H * F + O * H + H + O))
    vmem_limit = int(min(48 << 20, max(2 * need, 16 << 20)))

    y = pl.pallas_call(
        _mlp_kernel,
        out_shape=jax.ShapeDtypeStruct((Bp, O), jnp.float32),
        grid=(n_tiles,),
        in_specs=[
            pl.BlockSpec((tb, F), lambda i: (i, 0)),    # x tile, natural layout
            pl.BlockSpec((H, F), lambda i: (0, 0)),     # W1, resident across grid
            pl.BlockSpec((1, H), lambda i: (0, 0)),     # b1, resident
            pl.BlockSpec((O, H), lambda i: (0, 0)),     # W2, resident
            pl.BlockSpec((1, O), lambda i: (0, 0)),     # b2, resident
        ],
        out_specs=pl.BlockSpec((tb, O), lambda i: (i, 0)),
        compiler_params=pltpu.CompilerParams(
            # Single step at small B; for huge B the batch tiles are independent,
            # so v7x megacore may shard them ("parallel" is harmless on v5e/v6e).
            dimension_semantics=("parallel",),
            vmem_limit_bytes=vmem_limit,
        ),
        cost_estimate=cost,
    )(x_in, w1, b1r, w2, b2r)

    return y if Bp == B else y[:B]


def _init_linear_pt(key, fan_in, fan_out):
    """PyTorch nn.Linear default init (uniform +/- 1/sqrt(fan_in)), PyTorch layout."""
    kw, kb = jax.random.split(key)
    bound = 1.0 / jnp.sqrt(jnp.float32(fan_in))
    W = jax.random.uniform(kw, (fan_out, fan_in), jnp.float32, -bound, bound)
    b = jax.random.uniform(kb, (fan_out,), jnp.float32, -bound, bound)
    return W, b


if __name__ == "__main__":
    # Module globals: n_features, n_hidden, n_out.
    n_features, n_hidden, n_out = 16, 32, 8
    batch = 1024            # single grid step on the fast path

    key = jax.random.PRNGKey(0)
    kx, k1, k2 = jax.random.split(key, 3)

    x = jax.random.normal(kx, (batch, n_features), jnp.float32)
    W1, b1 = _init_linear_pt(k1, n_features, n_hidden)
    W2, b2 = _init_linear_pt(k2, n_hidden, n_out)

    out = two_layer_regression_forward(x, W1, b1, W2, b2)
    out = jax.block_until_ready(out)

    # Pure-JAX reference (mirrors torch.relu(linear_2(tanh(linear_1(x)))) + 0.001).
    ref = jnp.maximum(jnp.tanh(x @ W1.T + b1) @ W2.T + b2, 0.0) + 0.001
    assert out.shape == (batch, n_out)
    assert jnp.allclose(out, ref, atol=1e-4, rtol=1e-4), "mismatch vs reference"

    print("KERNEL_OK")
</pallas_src>

<mosaic_0001>
module attributes {stable_mosaic.version = 11 : i64} {
  func.func @_mlp_kernel(%arg0: i32, %arg1: memref<1024x16xf32, #tpu.memory_space<vmem>>, %arg2: memref<32x16xf32, #tpu.memory_space<vmem>>, %arg3: memref<1x32xf32, #tpu.memory_space<vmem>>, %arg4: memref<8x32xf32, #tpu.memory_space<vmem>>, %arg5: memref<1x8xf32, #tpu.memory_space<vmem>>, %arg6: memref<1024x8xf32, #tpu.memory_space<vmem>>) attributes {dimension_semantics = [#tpu.dimension_semantics<parallel>], iteration_bounds = array<i64: 1>, scalar_prefetch = 0 : i64, scratch_operands = 0 : i64, tpu.core_type = #tpu.core_type<tc>, window_params = [{transform_indices = @transform_0, window_bounds = array<i64: 1024, 16>}, {pipeline_mode = #tpu.pipeline_mode<synchronous>, transform_indices = @transform_1, window_bounds = array<i64: 32, 16>}, {pipeline_mode = #tpu.pipeline_mode<synchronous>, transform_indices = @transform_2, window_bounds = array<i64: 1, 32>}, {pipeline_mode = #tpu.pipeline_mode<synchronous>, transform_indices = @transform_3, window_bounds = array<i64: 8, 32>}, {pipeline_mode = #tpu.pipeline_mode<synchronous>, transform_indices = @transform_4, window_bounds = array<i64: 1, 8>}, {transform_indices = @transform_5, window_bounds = array<i64: 1024, 8>}]} {
    %c0 = arith.constant 0 : index
    %c0_0 = arith.constant 0 : index
    %0 = vector.load %arg3[%c0, %c0_0] : memref<1x32xf32, #tpu.memory_space<vmem>>, vector<1x32xf32>
    %c0_1 = arith.constant 0 : index
    %c0_2 = arith.constant 0 : index
    %1 = vector.load %arg5[%c0_1, %c0_2] : memref<1x8xf32, #tpu.memory_space<vmem>>, vector<1x8xf32>
    %c0_3 = arith.constant 0 : index
    %c0_4 = arith.constant 0 : index
    %2 = vector.load %arg1[%c0_3, %c0_4] : memref<1024x16xf32, #tpu.memory_space<vmem>>, vector<1024x16xf32>
    %c0_5 = arith.constant 0 : index
    %c0_6 = arith.constant 0 : index
    %3 = vector.load %arg2[%c0_5, %c0_6] : memref<32x16xf32, #tpu.memory_space<vmem>>, vector<32x16xf32>
    %cst = arith.constant dense<0.000000e+00> : vector<1024x32xf32>
    %4 = tpu.matmul %2, %3, %cst {dimension_numbers = #tpu.dot_dimension_numbers<[1], [1], [0], [0], [0, 0, 1, 0], [], []>} : vector<1024x16xf32>, vector<32x16xf32>, vector<1024x32xf32> -> vector<1024x32xf32>
    %5 = vector.broadcast %0 : vector<1x32xf32> to vector<1024x32xf32>
    %6 = arith.addf %4, %5 : vector<1024x32xf32>
    %7 = math.tanh %6 : vector<1024x32xf32>
    %c0_7 = arith.constant 0 : index
    %c0_8 = arith.constant 0 : index
    %8 = vector.load %arg4[%c0_7, %c0_8] : memref<8x32xf32, #tpu.memory_space<vmem>>, vector<8x32xf32>
    %cst_9 = arith.constant dense<0.000000e+00> : vector<1024x8xf32>
    %9 = tpu.matmul %7, %8, %cst_9 {dimension_numbers = #tpu.dot_dimension_numbers<[1], [1], [0], [0], [0, 0, 1, 0], [], []>} : vector<1024x32xf32>, vector<8x32xf32>, vector<1024x8xf32> -> vector<1024x8xf32>
    %10 = vector.broadcast %1 : vector<1x8xf32> to vector<1024x8xf32>
    %11 = arith.addf %9, %10 : vector<1024x8xf32>
    %cst_10 = arith.constant 0.000000e+00 : f32
    %12 = vector.broadcast %cst_10 : f32 to vector<1024x8xf32>
    %13 = arith.maximumf %11, %12 : vector<1024x8xf32>
    %cst_11 = arith.constant 1.000000e-03 : f32
    %14 = vector.broadcast %cst_11 : f32 to vector<1024x8xf32>
    %15 = arith.addf %13, %14 : vector<1024x8xf32>
    %c0_12 = arith.constant 0 : index
    %c0_13 = arith.constant 0 : index
    %16 = vector.load %arg6[%c0_12, %c0_13] : memref<1024x8xf32, #tpu.memory_space<vmem>>, vector<1024x8xf32>
    tpu.vector_store %arg6[%c0_12, %c0_13], %15 {strides = array<i32>} : memref<1024x8xf32, #tpu.memory_space<vmem>>, vector<1024x8xf32>,
    return
  }
  func.func @transform_0(%arg0: i32) -> (i32, i32) {
    %c0_i32 = arith.constant 0 : i32
    %c0_i32_0 = arith.constant 0 : i32
    return %arg0, %c0_i32 : i32, i32
  }
  func.func @transform_1(%arg0: i32) -> (i32, i32) {
    %c0_i32 = arith.constant 0 : i32
    %c0_i32_0 = arith.constant 0 : i32
    %c0_i32_1 = arith.constant 0 : i32
    return %c0_i32, %c0_i32_0 : i32, i32
  }
  func.func @transform_2(%arg0: i32) -> (i32, i32) {
    %c0_i32 = arith.constant 0 : i32
    %c0_i32_0 = arith.constant 0 : i32
    %c0_i32_1 = arith.constant 0 : i32
    return %c0_i32, %c0_i32_0 : i32, i32
  }
  func.func @transform_3(%arg0: i32) -> (i32, i32) {
    %c0_i32 = arith.constant 0 : i32
    %c0_i32_0 = arith.constant 0 : i32
    %c0_i32_1 = arith.constant 0 : i32
    return %c0_i32, %c0_i32_0 : i32, i32
  }
  func.func @transform_4(%arg0: i32) -> (i32, i32) {
    %c0_i32 = arith.constant 0 : i32
    %c0_i32_0 = arith.constant 0 : i32
    %c0_i32_1 = arith.constant 0 : i32
    return %c0_i32, %c0_i32_0 : i32, i32
  }
  func.func @transform_5(%arg0: i32) -> (i32, i32) {
    %c0_i32 = arith.constant 0 : i32
    %c0_i32_0 = arith.constant 0 : i32
    return %arg0, %c0_i32 : i32, i32
  }
}

</mosaic_0001>

<llo_original>
// kernel: tpu_custom_call.1
$region0: #{tpu_custom_call.1}
  #allocation0 [shape = 'u32[]', space=smem, size = 0x4, offset = 0x4, fixed_abs, tag = 'smem constant byte address 0x4 - core index']
  #allocation1 [shape = 'u32[72,128]{1,0:T(1,128)}', space=vmem, size = 0x9000, scoped, tag = 'internal scratch']
  %s0 = inlined_call_operand.vmem [shape: f32[1024,16], index: 0, kind: input, shape index: {}]
  %s1 = inlined_call_operand.vmem [shape: f32[32,16], index: 1, kind: input, shape index: {}]
  %s2 = inlined_call_operand.vmem [shape: f32[1,32], index: 2, kind: input, shape index: {}]
  %s3 = inlined_call_operand.vmem [shape: f32[8,32], index: 3, kind: input, shape index: {}]
  %s4 = inlined_call_operand.vmem [shape: f32[1,8], index: 4, kind: input, shape index: {}]
  %s5 = inlined_call_operand.vmem [shape: f32[1024,8], index: 5, kind: output, shape index: {}]
  %s6 = sld [smem:[#allocation0]]
  $region30: #{tpu_custom_call.1} parent=0
    _
  %s8 = ssub.s32 1, %s6
  %s9 = scalar_select 0, %s8, %s6
  // Predicated region
  $region2: #{tpu_custom_call.1} parent=0 // pred_check
    _
  $region3: #{tpu_custom_call.1} parent=0 // pred_check_branch
    %11 = sbr.rel (0) target = $region5
  $region4: #{tpu_custom_call.1} parent=0 // pred_region
    _
  $region5: #{tpu_custom_call.1} parent=0 // pred_fallthru
    _
  // Predicated region
  $region6: #{tpu_custom_call.1} parent=0 // pred_check
    _
  $region7: #{tpu_custom_call.1} parent=0 // pred_check_branch
    %13 = sbr.rel (0) target = $region9
  $region8: #{tpu_custom_call.1} parent=0 // pred_region
    _
  $region9: #{tpu_custom_call.1} parent=0 // pred_fallthru
    _
  // Predicated region
  $region10: #{tpu_custom_call.1} parent=0 // pred_check
    _
  $region11: #{tpu_custom_call.1} parent=0 // pred_check_branch
    %15 = sbr.rel (0) target = $region13
  $region12: #{tpu_custom_call.1} parent=0 // pred_region
    _
  $region13: #{tpu_custom_call.1} parent=0 // pred_fallthru
    _
  // Predicated region
  $region14: #{tpu_custom_call.1} parent=0 // pred_check
    _
  $region15: #{tpu_custom_call.1} parent=0 // pred_check_branch
    %17 = sbr.rel (0) target = $region17
  $region16: #{tpu_custom_call.1} parent=0 // pred_region
    _
  $region17: #{tpu_custom_call.1} parent=0 // pred_fallthru
    _
  // Predicated region
  $region18: #{tpu_custom_call.1} parent=0 // pred_check
    _
  $region19: #{tpu_custom_call.1} parent=0 // pred_check_branch
    %19 = sbr.rel (0) target = $region21
  $region20: #{tpu_custom_call.1} parent=0 // pred_region
    _
  $region21: #{tpu_custom_call.1} parent=0 // pred_fallthru
    _
  %v20 = vld [vmem:[%s2] sm:$0x1]
  %v21 = vld [vmem:[%s4] sm:$0x1]
  %v22 = vld [vmem:[%s0] sm:$0xff]
  %v23 = vld [vmem:[%s0 + $0x8] sm:$0xff]
  %v24 = vld [vmem:[%s0 + $0x10] sm:$0xff]
  %v25 = vld [vmem:[%s0 + $0x18] sm:$0xff]
  %v26 = vld [vmem:[%s0 + $0x20] sm:$0xff]
  %v27 = vld [vmem:[%s0 + $0x28] sm:$0xff]
  %v28 = vld [vmem:[%s0 + $0x30] sm:$0xff]
  %v29 = vld [vmem:[%s0 + $0x38] sm:$0xff]
  %v30 = vld [vmem:[%s0 + $0x40] sm:$0xff]
  %v31 = vld [vmem:[%s0 + $0x48] sm:$0xff]
  %v32 = vld [vmem:[%s0 + $0x50] sm:$0xff]
  %v33 = vld [vmem:[%s0 + $0x58] sm:$0xff]
  %v34 = vld [vmem:[%s0 + $0x60] sm:$0xff]
  %v35 = vld [vmem:[%s0 + $0x68] sm:$0xff]
  %v36 = vld [vmem:[%s0 + $0x70] sm:$0xff]
  %v37 = vld [vmem:[%s0 + $0x78] sm:$0xff]
  %v38 = vld [vmem:[%s0 + $0x80] sm:$0xff]
  %v39 = vld [vmem:[%s0 + $0x88] sm:$0xff]
  %v40 = vld [vmem:[%s0 + $0x90] sm:$0xff]
  %v41 = vld [vmem:[%s0 + $0x98] sm:$0xff]
  %v42 = vld [vmem:[%s0 + $0xa0] sm:$0xff]
  %v43 = vld [vmem:[%s0 + $0xa8] sm:$0xff]
  %v44 = vld [vmem:[%s0 + $0xb0] sm:$0xff]
  %v45 = vld [vmem:[%s0 + $0xb8] sm:$0xff]
  %v46 = vld [vmem:[%s0 + $0xc0] sm:$0xff]
  %v47 = vld [vmem:[%s0 + $0xc8] sm:$0xff]
  %v48 = vld [vmem:[%s0 + $0xd0] sm:$0xff]
  %v49 = vld [vmem:[%s0 + $0xd8] sm:$0xff]
  %v50 = vld [vmem:[%s0 + $0xe0] sm:$0xff]
  %v51 = vld [vmem:[%s0 + $0xe8] sm:$0xff]
  %v52 = vld [vmem:[%s0 + $0xf0] sm:$0xff]
  %v53 = vld [vmem:[%s0 + $0xf8] sm:$0xff]
  %v54 = vld [vmem:[%s0 + $0x100] sm:$0xff]
  %v55 = vld [vmem:[%s0 + $0x108] sm:$0xff]
  %v56 = vld [vmem:[%s0 + $0x110] sm:$0xff]
  %v57 = vld [vmem:[%s0 + $0x118] sm:$0xff]
  %v58 = vld [vmem:[%s0 + $0x120] sm:$0xff]
  %v59 = vld [vmem:[%s0 + $0x128] sm:$0xff]
  %v60 = vld [vmem:[%s0 + $0x130] sm:$0xff]
  %v61 = vld [vmem:[%s0 + $0x138] sm:$0xff]
  %v62 = vld [vmem:[%s0 + $0x140] sm:$0xff]
  %v63 = vld [vmem:[%s0 + $0x148] sm:$0xff]
  %v64 = vld [vmem:[%s0 + $0x150] sm:$0xff]
  %v65 = vld [vmem:[%s0 + $0x158] sm:$0xff]
  %v66 = vld [vmem:[%s0 + $0x160] sm:$0xff]
  %v67 = vld [vmem:[%s0 + $0x168] sm:$0xff]
  %v68 = vld [vmem:[%s0 + $0x170] sm:$0xff]
  %v69 = vld [vmem:[%s0 + $0x178] sm:$0xff]
  %v70 = vld [vmem:[%s0 + $0x180] sm:$0xff]
  %v71 = vld [vmem:[%s0 + $0x188] sm:$0xff]
  %v72 = vld [vmem:[%s0 + $0x190] sm:$0xff]
  %v73 = vld [vmem:[%s0 + $0x198] sm:$0xff]
  %v74 = vld [vmem:[%s0 + $0x1a0] sm:$0xff]
  %v75 = vld [vmem:[%s0 + $0x1a8] sm:$0xff]
  %v76 = vld [vmem:[%s0 + $0x1b0] sm:$0xff]
  %v77 = vld [vmem:[%s0 + $0x1b8] sm:$0xff]
  %v78 = vld [vmem:[%s0 + $0x1c0] sm:$0xff]
  %v79 = vld [vmem:[%s0 + $0x1c8] sm:$0xff]
  %v80 = vld [vmem:[%s0 + $0x1d0] sm:$0xff]
  %v81 = vld [vmem:[%s0 + $0x1d8] sm:$0xff]
  %v82 = vld [vmem:[%s0 + $0x1e0] sm:$0xff]
  %v83 = vld [vmem:[%s0 + $0x1e8] sm:$0xff]
  %v84 = vld [vmem:[%s0 + $0x1f0] sm:$0xff]
  %v85 = vld [vmem:[%s0 + $0x1f8] sm:$0xff]
  %v86 = vld [vmem:[%s0 + $0x200] sm:$0xff]
  %v87 = vld [vmem:[%s0 + $0x208] sm:$0xff]
  %v88 = vld [vmem:[%s0 + $0x210] sm:$0xff]
  %v89 = vld [vmem:[%s0 + $0x218] sm:$0xff]
  %v90 = vld [vmem:[%s0 + $0x220] sm:$0xff]
  %v91 = vld [vmem:[%s0 + $0x228] sm:$0xff]
  %v92 = vld [vmem:[%s0 + $0x230] sm:$0xff]
  %v93 = vld [vmem:[%s0 + $0x238] sm:$0xff]
  %v94 = vld [vmem:[%s0 + $0x240] sm:$0xff]
  %v95 = vld [vmem:[%s0 + $0x248] sm:$0xff]
  %v96 = vld [vmem:[%s0 + $0x250] sm:$0xff]
  %v97 = vld [vmem:[%s0 + $0x258] sm:$0xff]
  %v98 = vld [vmem:[%s0 + $0x260] sm:$0xff]
  %v99 = vld [vmem:[%s0 + $0x268] sm:$0xff]
  %v100 = vld [vmem:[%s0 + $0x270] sm:$0xff]
  %v101 = vld [vmem:[%s0 + $0x278] sm:$0xff]
  %v102 = vld [vmem:[%s0 + $0x280] sm:$0xff]
  %v103 = vld [vmem:[%s0 + $0x288] sm:$0xff]
  %v104 = vld [vmem:[%s0 + $0x290] sm:$0xff]
  %v105 = vld [vmem:[%s0 + $0x298] sm:$0xff]
  %v106 = vld [vmem:[%s0 + $0x2a0] sm:$0xff]
  %v107 = vld [vmem:[%s0 + $0x2a8] sm:$0xff]
  %v108 = vld [vmem:[%s0 + $0x2b0] sm:$0xff]
  %v109 = vld [vmem:[%s0 + $0x2b8] sm:$0xff]
  %v110 = vld [vmem:[%s0 + $0x2c0] sm:$0xff]
  %v111 = vld [vmem:[%s0 + $0x2c8] sm:$0xff]
  %v112 = vld [vmem:[%s0 + $0x2d0] sm:$0xff]
  %v113 = vld [vmem:[%s0 + $0x2d8] sm:$0xff]
  %v114 = vld [vmem:[%s0 + $0x2e0] sm:$0xff]
  %v115 = vld [vmem:[%s0 + $0x2e8] sm:$0xff]
  %v116 = vld [vmem:[%s0 + $0x2f0] sm:$0xff]
  %v117 = vld [vmem:[%s0 + $0x2f8] sm:$0xff]
  %v118 = vld [vmem:[%s0 + $0x300] sm:$0xff]
  %v119 = vld [vmem:[%s0 + $0x308] sm:$0xff]
  %v120 = vld [vmem:[%s0 + $0x310] sm:$0xff]
  %v121 = vld [vmem:[%s0 + $0x318] sm:$0xff]
  %v122 = vld [vmem:[%s0 + $0x320] sm:$0xff]
  %v123 = vld [vmem:[%s0 + $0x328] sm:$0xff]
  %v124 = vld [vmem:[%s0 + $0x330] sm:$0xff]
  %v125 = vld [vmem:[%s0 + $0x338] sm:$0xff]
  %v126 = vld [vmem:[%s0 + $0x340] sm:$0xff]
  %v127 = vld [vmem:[%s0 + $0x348] sm:$0xff]
  %v128 = vld [vmem:[%s0 + $0x350] sm:$0xff]
  %v129 = vld [vmem:[%s0 + $0x358] sm:$0xff]
  %v130 = vld [vmem:[%s0 + $0x360] sm:$0xff]
  %v131 = vld [vmem:[%s0 + $0x368] sm:$0xff]
  %v132 = vld [vmem:[%s0 + $0x370] sm:$0xff]
  %v133 = vld [vmem:[%s0 + $0x378] sm:$0xff]
  %v134 = vld [vmem:[%s0 + $0x380] sm:$0xff]
  %v135 = vld [vmem:[%s0 + $0x388] sm:$0xff]
  %v136 = vld [vmem:[%s0 + $0x390] sm:$0xff]
  %v137 = vld [vmem:[%s0 + $0x398] sm:$0xff]
  %v138 = vld [vmem:[%s0 + $0x3a0] sm:$0xff]
  %v139 = vld [vmem:[%s0 + $0x3a8] sm:$0xff]
  %v140 = vld [vmem:[%s0 + $0x3b0] sm:$0xff]
  %v141 = vld [vmem:[%s0 + $0x3b8] sm:$0xff]
  %v142 = vld [vmem:[%s0 + $0x3c0] sm:$0xff]
  %v143 = vld [vmem:[%s0 + $0x3c8] sm:$0xff]
  %v144 = vld [vmem:[%s0 + $0x3d0] sm:$0xff]
  %v145 = vld [vmem:[%s0 + $0x3d8] sm:$0xff]
  %v146 = vld [vmem:[%s0 + $0x3e0] sm:$0xff]
  %v147 = vld [vmem:[%s0 + $0x3e8] sm:$0xff]
  %v148 = vld [vmem:[%s0 + $0x3f0] sm:$0xff]
  %v149 = vld [vmem:[%s0 + $0x3f8] sm:$0xff]
  %v150 = vld [vmem:[%s1] sm:$0xff]
  %v151 = vld [vmem:[%s1 + $0x8] sm:$0xff]
  %v152 = vld [vmem:[%s1 + $0x10] sm:$0xff]
  %v153 = vld [vmem:[%s1 + $0x18] sm:$0xff]
  %v155 = vperm.slane %v20, 0
  %vm157 = vcmask 130048
  %v159 = vsel %vm157, %v22, 0
  %v162 = vsel %vm157, %v23, 0
  %v165 = vsel %vm157, %v24, 0
  %v168 = vsel %vm157, %v25, 0
  %v171 = vsel %vm157, %v26, 0
  %v174 = vsel %vm157, %v27, 0
  %v177 = vsel %vm157, %v28, 0
  %v180 = vsel %vm157, %v29, 0
  %v183 = vsel %vm157, %v30, 0
  %v186 = vsel %vm157, %v31, 0
  %v189 = vsel %vm157, %v32, 0
  %v192 = vsel %vm157, %v33, 0
  %v195 = vsel %vm157, %v34, 0
  %v198 = vsel %vm157, %v35, 0
  %v201 = vsel %vm157, %v36, 0
  %v204 = vsel %vm157, %v37, 0
  %v207 = vsel %vm157, %v38, 0
  %v210 = vsel %vm157, %v39, 0
  %v213 = vsel %vm157, %v40, 0
  %v216 = vsel %vm157, %v41, 0
  %v219 = vsel %vm157, %v42, 0
  %v222 = vsel %vm157, %v43, 0
  %v225 = vsel %vm157, %v44, 0
  %v228 = vsel %vm157, %v45, 0
  %v231 = vsel %vm157, %v46, 0
  %v234 = vsel %vm157, %v47, 0
  %v237 = vsel %vm157, %v48, 0
  %v240 = vsel %vm157, %v49, 0
  %v243 = vsel %vm157, %v50, 0
  %v246 = vsel %vm157, %v51, 0
  %v249 = vsel %vm157, %v52, 0
  %v252 = vsel %vm157, %v53, 0
  %v255 = vsel %vm157, %v54, 0
  %v258 = vsel %vm157, %v55, 0
  %v261 = vsel %vm157, %v56, 0
  %v264 = vsel %vm157, %v57, 0
  %v267 = vsel %vm157, %v58, 0
  %v270 = vsel %vm157, %v59, 0
  %v273 = vsel %vm157, %v60, 0
  %v276 = vsel %vm157, %v61, 0
  %v279 = vsel %vm157, %v62, 0
  %v282 = vsel %vm157, %v63, 0
  %v285 = vsel %vm157, %v64, 0
  %v288 = vsel %vm157, %v65, 0
  %v291 = vsel %vm157, %v66, 0
  %v294 = vsel %vm157, %v67, 0
  %v297 = vsel %vm157, %v68, 0
  %v300 = vsel %vm157, %v69, 0
  %v303 = vsel %vm157, %v70, 0
  %v306 = vsel %vm157, %v71, 0
  %v309 = vsel %vm157, %v72, 0
  %v312 = vsel %vm157, %v73, 0
  %v315 = vsel %vm157, %v74, 0
  %v318 = vsel %vm157, %v75, 0
  %v321 = vsel %vm157, %v76, 0
  %v324 = vsel %vm157, %v77, 0
  %v327 = vsel %vm157, %v78, 0
  %v330 = vsel %vm157, %v79, 0
  %v333 = vsel %vm157, %v80, 0
  %v336 = vsel %vm157, %v81, 0
  %v339 = vsel %vm157, %v82, 0
  %v342 = vsel %vm157, %v83, 0
  %v345 = vsel %vm157, %v84, 0
  %v348 = vsel %vm157, %v85, 0
  %v351 = vsel %vm157, %v86, 0
  %v354 = vsel %vm157, %v87, 0
  %v357 = vsel %vm157, %v88, 0
  %v360 = vsel %vm157, %v89, 0
  %v363 = vsel %vm157, %v90, 0
  %v366 = vsel %vm157, %v91, 0
  %v369 = vsel %vm157, %v92, 0
  %v372 = vsel %vm157, %v93, 0
  %v375 = vsel %vm157, %v94, 0
  %v378 = vsel %vm157, %v95, 0
  %v381 = vsel %vm157, %v96, 0
  %v384 = vsel %vm157, %v97, 0
  %v387 = vsel %vm157, %v98, 0
  %v390 = vsel %vm157, %v99, 0
  %v393 = vsel %vm157, %v100, 0
  %v396 = vsel %vm157, %v101, 0
  %v399 = vsel %vm157, %v102, 0
  %v402 = vsel %vm157, %v103, 0
  %v405 = vsel %vm157, %v104, 0
  %v408 = vsel %vm157, %v105, 0
  %v411 = vsel %vm157, %v106, 0
  %v414 = vsel %vm157, %v107, 0
  %v417 = vsel %vm157, %v108, 0
  %v420 = vsel %vm157, %v109, 0
  %v423 = vsel %vm157, %v110, 0
  %v426 = vsel %vm157, %v111, 0
  %v429 = vsel %vm157, %v112, 0
  %v432 = vsel %vm157, %v113, 0
  %v435 = vsel %vm157, %v114, 0
  %v438 = vsel %vm157, %v115, 0
  %v441 = vsel %vm157, %v116, 0
  %v444 = vsel %vm157, %v117, 0
  %v447 = vsel %vm157, %v118, 0
  %v450 = vsel %vm157, %v119, 0
  %v453 = vsel %vm157, %v120, 0
  %v456 = vsel %vm157, %v121, 0
  %v459 = vsel %vm157, %v122, 0
  %v462 = vsel %vm157, %v123, 0
  %v465 = vsel %vm157, %v124, 0
  %v468 = vsel %vm157, %v125, 0
  %v471 = vsel %vm157, %v126, 0
  %v474 = vsel %vm157, %v127, 0
  %v477 = vsel %vm157, %v128, 0
  %v480 = vsel %vm157, %v129, 0
  %v483 = vsel %vm157, %v130, 0
  %v486 = vsel %vm157, %v131, 0
  %v489 = vsel %vm157, %v132, 0
  %v492 = vsel %vm157, %v133, 0
  %v495 = vsel %vm157, %v134, 0
  %v498 = vsel %vm157, %v135, 0
  %v501 = vsel %vm157, %v136, 0
  %v504 = vsel %vm157, %v137, 0
  %v507 = vsel %vm157, %v138, 0
  %v510 = vsel %vm157, %v139, 0
  %v513 = vsel %vm157, %v140, 0
  %v516 = vsel %vm157, %v141, 0
  %v519 = vsel %vm157, %v142, 0
  %v522 = vsel %vm157, %v143, 0
  %v525 = vsel %vm157, %v144, 0
  %v528 = vsel %vm157, %v145, 0
  %v531 = vsel %vm157, %v146, 0
  %v534 = vsel %vm157, %v147, 0
  %v537 = vsel %vm157, %v148, 0
  %v540 = vsel %vm157, %v149, 0
  %v543 = vsel %vm157, %v150, 0
  %v546 = vsel %vm157, %v151, 0
  %v549 = vsel %vm157, %v152, 0
  %v552 = vsel %vm157, %v153, 0
  %554 = vmatpush.xpose.msra.mxu0 0.0
  %555 = vmatpush.xpose.msra.mxu0 0.0
  %556 = vmatpush.xpose.msra.mxu0 0.0
  %557 = vmatpush.xpose.msra.mxu0 0.0
  %558 = vmatpush.xpose.msra.mxu0 0.0
  %559 = vmatpush.xpose.msra.mxu0 0.0
  %560 = vmatpush.xpose.msra.mxu0 0.0
  %561 = vmatpush.xpose.msra.mxu0 0.0
  %562 = vmatpush.xpose.msra.mxu0 0.0
  %563 = vmatpush.xpose.msra.mxu0 0.0
  %564 = vmatpush.xpose.msra.mxu0 0.0
  %565 = vmatpush.xpose.msra.mxu0 0.0
  %566 = vmatpush.xpose.msra.mxu0 %v552
  %567 = vmatpush.xpose.msra.mxu0 %v549
  %568 = vmatpush.xpose.msra.mxu0 %v546
  %569 = vmatpush.xpose.msra.mxu0 %v543
  %570 = vmatmul.f32.gmra.mxu0 %v159
  %v571 = vpop.f32.mrf.mxu0
  %v572 = vadd.f32 %v155, %v571
  %573 = vmatmul.f32.gmra.mxu0 %v162
  %v574 = vpop.f32.mrf.mxu0
  %v575 = vadd.f32 %v155, %v574
  %576 = vmatmul.f32.gmra.mxu0 %v165
  %v577 = vpop.f32.mrf.mxu0
  %v578 = vadd.f32 %v155, %v577
  %579 = vmatmul.f32.gmra.mxu0 %v168
  %v580 = vpop.f32.mrf.mxu0
  %v581 = vadd.f32 %v155, %v580
  %582 = vmatmul.f32.gmra.mxu0 %v171
  %v583 = vpop.f32.mrf.mxu0
  %v584 = vadd.f32 %v155, %v583
  %585 = vmatmul.f32.gmra.mxu0 %v174
  %v586 = vpop.f32.mrf.mxu0
  %v587 = vadd.f32 %v155, %v586
  %588 = vmatmul.f32.gmra.mxu0 %v177
  %v589 = vpop.f32.mrf.mxu0
  %v590 = vadd.f32 %v155, %v589
  %591 = vmatmul.f32.gmra.mxu0 %v180
  %v592 = vpop.f32.mrf.mxu0
  %v593 = vadd.f32 %v155, %v592
  %594 = vmatmul.f32.gmra.mxu0 %v183
  %v595 = vpop.f32.mrf.mxu0
  %v596 = vadd.f32 %v155, %v595
  %597 = vmatmul.f32.gmra.mxu0 %v186
  %v598 = vpop.f32.mrf.mxu0
  %v599 = vadd.f32 %v155, %v598
  %600 = vmatmul.f32.gmra.mxu0 %v189
  %v601 = vpop.f32.mrf.mxu0
  %v602 = vadd.f32 %v155, %v601
  %603 = vmatmul.f32.gmra.mxu0 %v192
  %v604 = vpop.f32.mrf.mxu0
  %v605 = vadd.f32 %v155, %v604
  %606 = vmatmul.f32.gmra.mxu0 %v195
  %v607 = vpop.f32.mrf.mxu0
  %v608 = vadd.f32 %v155, %v607
  %609 = vmatmul.f32.gmra.mxu0 %v198
  %v610 = vpop.f32.mrf.mxu0
  %v611 = vadd.f32 %v155, %v610
  %612 = vmatmul.f32.gmra.mxu0 %v201
  %v613 = vpop.f32.mrf.mxu0
  %v614 = vadd.f32 %v155, %v613
  %615 = vmatmul.f32.gmra.mxu0 %v204
  %v616 = vpop.f32.mrf.mxu0
  %v617 = vadd.f32 %v155, %v616
  %618 = vmatmul.f32.gmra.mxu0 %v207
  %v619 = vpop.f32.mrf.mxu0
  %v620 = vadd.f32 %v155, %v619
  %621 = vmatmul.f32.gmra.mxu0 %v210
  %v622 = vpop.f32.mrf.mxu0
  %v623 = vadd.f32 %v155, %v622
  %624 = vmatmul.f32.gmra.mxu0 %v213
  %v625 = vpop.f32.mrf.mxu0
  %v626 = vadd.f32 %v155, %v625
  %627 = vmatmul.f32.gmra.mxu0 %v216
  %v628 = vpop.f32.mrf.mxu0
  %v629 = vadd.f32 %v155, %v628
  %630 = vmatmul.f32.gmra.mxu0 %v219
  %v631 = vpop.f32.mrf.mxu0
  %v632 = vadd.f32 %v155, %v631
  %633 = vmatmul.f32.gmra.mxu0 %v222
  %v634 = vpop.f32.mrf.mxu0
  %v635 = vadd.f32 %v155, %v634
  %636 = vmatmul.f32.gmra.mxu0 %v225
  %v637 = vpop.f32.mrf.mxu0
  %v638 = vadd.f32 %v155, %v637
  %639 = vmatmul.f32.gmra.mxu0 %v228
  %v640 = vpop.f32.mrf.mxu0
  %v641 = vadd.f32 %v155, %v640
  %642 = vmatmul.f32.gmra.mxu0 %v231
  %v643 = vpop.f32.mrf.mxu0
  %v644 = vadd.f32 %v155, %v643
  %645 = vmatmul.f32.gmra.mxu0 %v234
  %v646 = vpop.f32.mrf.mxu0
  %v647 = vadd.f32 %v155, %v646
  %648 = vmatmul.f32.gmra.mxu0 %v237
  %v649 = vpop.f32.mrf.mxu0
  %v650 = vadd.f32 %v155, %v649
  %651 = vmatmul.f32.gmra.mxu0 %v240
  %v652 = vpop.f32.mrf.mxu0
  %v653 = vadd.f32 %v155, %v652
  %654 = vmatmul.f32.gmra.mxu0 %v243
  %v655 = vpop.f32.mrf.mxu0
  %v656 = vadd.f32 %v155, %v655
  %657 = vmatmul.f32.gmra.mxu0 %v246
  %v658 = vpop.f32.mrf.mxu0
  %v659 = vadd.f32 %v155, %v658
  %660 = vmatmul.f32.gmra.mxu0 %v249
  %v661 = vpop.f32.mrf.mxu0
  %v662 = vadd.f32 %v155, %v661
  %663 = vmatmul.f32.gmra.mxu0 %v252
  %v664 = vpop.f32.mrf.mxu0
  %v665 = vadd.f32 %v155, %v664
  %666 = vmatmul.f32.gmra.mxu0 %v255
  %v667 = vpop.f32.mrf.mxu0
  %v668 = vadd.f32 %v155, %v667
  %669 = vmatmul.f32.gmra.mxu0 %v258
  %v670 = vpop.f32.mrf.mxu0
  %v671 = vadd.f32 %v155, %v670
  %672 = vmatmul.f32.gmra.mxu0 %v261
  %v673 = vpop.f32.mrf.mxu0
  %v674 = vadd.f32 %v155, %v673
  %675 = vmatmul.f32.gmra.mxu0 %v264
  %v676 = vpop.f32.mrf.mxu0
  %v677 = vadd.f32 %v155, %v676
  %678 = vmatmul.f32.gmra.mxu0 %v267
  %v679 = vpop.f32.mrf.mxu0
  %v680 = vadd.f32 %v155, %v679
  %681 = vmatmul.f32.gmra.mxu0 %v270
  %v682 = vpop.f32.mrf.mxu0
  %v683 = vadd.f32 %v155, %v682
  %684 = vmatmul.f32.gmra.mxu0 %v273
  %v685 = vpop.f32.mrf.mxu0
  %v686 = vadd.f32 %v155, %v685
  %687 = vmatmul.f32.gmra.mxu0 %v276
  %v688 = vpop.f32.mrf.mxu0
  %v689 = vadd.f32 %v155, %v688
  %690 = vmatmul.f32.gmra.mxu0 %v279
  %v691 = vpop.f32.mrf.mxu0
  %v692 = vadd.f32 %v155, %v691
  %693 = vmatmul.f32.gmra.mxu0 %v282
  %v694 = vpop.f32.mrf.mxu0
  %v695 = vadd.f32 %v155, %v694
  %696 = vmatmul.f32.gmra.mxu0 %v285
  %v697 = vpop.f32.mrf.mxu0
  %v698 = vadd.f32 %v155, %v697
  %699 = vmatmul.f32.gmra.mxu0 %v288
  %v700 = vpop.f32.mrf.mxu0
  %v701 = vadd.f32 %v155, %v700
  %702 = vmatmul.f32.gmra.mxu0 %v291
  %v703 = vpop.f32.mrf.mxu0
  %v704 = vadd.f32 %v155, %v703
  %705 = vmatmul.f32.gmra.mxu0 %v294
  %v706 = vpop.f32.mrf.mxu0
  %v707 = vadd.f32 %v155, %v706
  %708 = vmatmul.f32.gmra.mxu0 %v297
  %v709 = vpop.f32.mrf.mxu0
  %v710 = vadd.f32 %v155, %v709
  %711 = vmatmul.f32.gmra.mxu0 %v300
  %v712 = vpop.f32.mrf.mxu0
  %v713 = vadd.f32 %v155, %v712
  %714 = vmatmul.f32.gmra.mxu0 %v303
  %v715 = vpop.f32.mrf.mxu0
  %v716 = vadd.f32 %v155, %v715
  %717 = vmatmul.f32.gmra.mxu0 %v306
  %v718 = vpop.f32.mrf.mxu0
  %v719 = vadd.f32 %v155, %v718
  %720 = vmatmul.f32.gmra.mxu0 %v309
  %v721 = vpop.f32.mrf.mxu0
  %v722 = vadd.f32 %v155, %v721
  %723 = vmatmul.f32.gmra.mxu0 %v312
  %v724 = vpop.f32.mrf.mxu0
  %v725 = vadd.f32 %v155, %v724
  %726 = vmatmul.f32.gmra.mxu0 %v315
  %v727 = vpop.f32.mrf.mxu0
  %v728 = vadd.f32 %v155, %v727
  %729 = vmatmul.f32.gmra.mxu0 %v318
  %v730 = vpop.f32.mrf.mxu0
  %v731 = vadd.f32 %v155, %v730
  %732 = vmatmul.f32.gmra.mxu0 %v321
  %v733 = vpop.f32.mrf.mxu0
  %v734 = vadd.f32 %v155, %v733
  %735 = vmatmul.f32.gmra.mxu0 %v324
  %v736 = vpop.f32.mrf.mxu0
  %v737 = vadd.f32 %v155, %v736
  %738 = vmatmul.f32.gmra.mxu0 %v327
  %v739 = vpop.f32.mrf.mxu0
  %v740 = vadd.f32 %v155, %v739
  %741 = vmatmul.f32.gmra.mxu0 %v330
  %v742 = vpop.f32.mrf.mxu0
  %v743 = vadd.f32 %v155, %v742
  %744 = vmatmul.f32.gmra.mxu0 %v333
  %v745 = vpop.f32.mrf.mxu0
  %v746 = vadd.f32 %v155, %v745
  %747 = vmatmul.f32.gmra.mxu0 %v336
  %v748 = vpop.f32.mrf.mxu0
  %v749 = vadd.f32 %v155, %v748
  %750 = vmatmul.f32.gmra.mxu0 %v339
  %v751 = vpop.f32.mrf.mxu0
  %v752 = vadd.f32 %v155, %v751
  %753 = vmatmul.f32.gmra.mxu0 %v342
  %v754 = vpop.f32.mrf.mxu0
  %v755 = vadd.f32 %v155, %v754
  %756 = vmatmul.f32.gmra.mxu0 %v345
  %v757 = vpop.f32.mrf.mxu0
  %v758 = vadd.f32 %v155, %v757
  %759 = vmatmul.f32.gmra.mxu0 %v348
  %v760 = vpop.f32.mrf.mxu0
  %v761 = vadd.f32 %v155, %v760
  %762 = vmatmul.f32.gmra.mxu0 %v351
  %v763 = vpop.f32.mrf.mxu0
  %v764 = vadd.f32 %v155, %v763
  %765 = vmatmul.f32.gmra.mxu0 %v354
  %v766 = vpop.f32.mrf.mxu0
  %v767 = vadd.f32 %v155, %v766
  %768 = vmatmul.f32.gmra.mxu0 %v357
  %v769 = vpop.f32.mrf.mxu0
  %v770 = vadd.f32 %v155, %v769
  %771 = vmatmul.f32.gmra.mxu0 %v360
  %v772 = vpop.f32.mrf.mxu0
  %v773 = vadd.f32 %v155, %v772
  %774 = vmatmul.f32.gmra.mxu0 %v363
  %v775 = vpop.f32.mrf.mxu0
  %v776 = vadd.f32 %v155, %v775
  %777 = vmatmul.f32.gmra.mxu0 %v366
  %v778 = vpop.f32.mrf.mxu0
  %v779 = vadd.f32 %v155, %v778
  %780 = vmatmul.f32.gmra.mxu0 %v369
  %v781 = vpop.f32.mrf.mxu0
  %v782 = vadd.f32 %v155, %v781
  %783 = vmatmul.f32.gmra.mxu0 %v372
  %v784 = vpop.f32.mrf.mxu0
  %v785 = vadd.f32 %v155, %v784
  %786 = vmatmul.f32.gmra.mxu0 %v375
  %v787 = vpop.f32.mrf.mxu0
  %v788 = vadd.f32 %v155, %v787
  %789 = vmatmul.f32.gmra.mxu0 %v378
  %v790 = vpop.f32.mrf.mxu0
  %v791 = vadd.f32 %v155, %v790
  %792 = vmatmul.f32.gmra.mxu0 %v381
  %v793 = vpop.f32.mrf.mxu0
  %v794 = vadd.f32 %v155, %v793
  %795 = vmatmul.f32.gmra.mxu0 %v384
  %v796 = vpop.f32.mrf.mxu0
  %v797 = vadd.f32 %v155, %v796
  %798 = vmatmul.f32.gmra.mxu0 %v387
  %v799 = vpop.f32.mrf.mxu0
  %v800 = vadd.f32 %v155, %v799
  %801 = vmatmul.f32.gmra.mxu0 %v390
  %v802 = vpop.f32.mrf.mxu0
  %v803 = vadd.f32 %v155, %v802
  %804 = vmatmul.f32.gmra.mxu0 %v393
  %v805 = vpop.f32.mrf.mxu0
  %v806 = vadd.f32 %v155, %v805
  %807 = vmatmul.f32.gmra.mxu0 %v396
  %v808 = vpop.f32.mrf.mxu0
  %v809 = vadd.f32 %v155, %v808
  %810 = vmatmul.f32.gmra.mxu0 %v399
  %v811 = vpop.f32.mrf.mxu0
  %v812 = vadd.f32 %v155, %v811
  %813 = vmatmul.f32.gmra.mxu0 %v402
  %v814 = vpop.f32.mrf.mxu0
  %v815 = vadd.f32 %v155, %v814
  %816 = vmatmul.f32.gmra.mxu0 %v405
  %v817 = vpop.f32.mrf.mxu0
  %v818 = vadd.f32 %v155, %v817
  %819 = vmatmul.f32.gmra.mxu0 %v408
  %v820 = vpop.f32.mrf.mxu0
  %v821 = vadd.f32 %v155, %v820
  %822 = vmatmul.f32.gmra.mxu0 %v411
  %v823 = vpop.f32.mrf.mxu0
  %v824 = vadd.f32 %v155, %v823
  %825 = vmatmul.f32.gmra.mxu0 %v414
  %v826 = vpop.f32.mrf.mxu0
  %v827 = vadd.f32 %v155, %v826
  %828 = vmatmul.f32.gmra.mxu0 %v417
  %v829 = vpop.f32.mrf.mxu0
  %v830 = vadd.f32 %v155, %v829
  %831 = vmatmul.f32.gmra.mxu0 %v420
  %v832 = vpop.f32.mrf.mxu0
  %v833 = vadd.f32 %v155, %v832
  %834 = vmatmul.f32.gmra.mxu0 %v423
  %v835 = vpop.f32.mrf.mxu0
  %v836 = vadd.f32 %v155, %v835
  %837 = vmatmul.f32.gmra.mxu0 %v426
  %v838 = vpop.f32.mrf.mxu0
  %v839 = vadd.f32 %v155, %v838
  %840 = vmatmul.f32.gmra.mxu0 %v429
  %v841 = vpop.f32.mrf.mxu0
  %v842 = vadd.f32 %v155, %v841
  %843 = vmatmul.f32.gmra.mxu0 %v432
  %v844 = vpop.f32.mrf.mxu0
  %v845 = vadd.f32 %v155, %v844
  %846 = vmatmul.f32.gmra.mxu0 %v435
  %v847 = vpop.f32.mrf.mxu0
  %v848 = vadd.f32 %v155, %v847
  %849 = vmatmul.f32.gmra.mxu0 %v438
  %v850 = vpop.f32.mrf.mxu0
  %v851 = vadd.f32 %v155, %v850
  %852 = vmatmul.f32.gmra.mxu0 %v441
  %v853 = vpop.f32.mrf.mxu0
  %v854 = vadd.f32 %v155, %v853
  %855 = vmatmul.f32.gmra.mxu0 %v444
  %v856 = vpop.f32.mrf.mxu0
  %v857 = vadd.f32 %v155, %v856
  %858 = vmatmul.f32.gmra.mxu0 %v447
  %v859 = vpop.f32.mrf.mxu0
  %v860 = vadd.f32 %v155, %v859
  %861 = vmatmul.f32.gmra.mxu0 %v450
  %v862 = vpop.f32.mrf.mxu0
  %v863 = vadd.f32 %v155, %v862
  %864 = vmatmul.f32.gmra.mxu0 %v453
  %v865 = vpop.f32.mrf.mxu0
  %v866 = vadd.f32 %v155, %v865
  %867 = vmatmul.f32.gmra.mxu0 %v456
  %v868 = vpop.f32.mrf.mxu0
  %v869 = vadd.f32 %v155, %v868
  %870 = vmatmul.f32.gmra.mxu0 %v459
  %v871 = vpop.f32.mrf.mxu0
  %v872 = vadd.f32 %v155, %v871
  %873 = vmatmul.f32.gmra.mxu0 %v462
  %v874 = vpop.f32.mrf.mxu0
  %v875 = vadd.f32 %v155, %v874
  %876 = vmatmul.f32.gmra.mxu0 %v465
  %v877 = vpop.f32.mrf.mxu0
  %v878 = vadd.f32 %v155, %v877
  %879 = vmatmul.f32.gmra.mxu0 %v468
  %v880 = vpop.f32.mrf.mxu0
  %v881 = vadd.f32 %v155, %v880
  %882 = vmatmul.f32.gmra.mxu0 %v471
  %v883 = vpop.f32.mrf.mxu0
  %v884 = vadd.f32 %v155, %v883
  %885 = vmatmul.f32.gmra.mxu0 %v474
  %v886 = vpop.f32.mrf.mxu0
  %v887 = vadd.f32 %v155, %v886
  %888 = vmatmul.f32.gmra.mxu0 %v477
  %v889 = vpop.f32.mrf.mxu0
  %v890 = vadd.f32 %v155, %v889
  %891 = vmatmul.f32.gmra.mxu0 %v480
  %v892 = vpop.f32.mrf.mxu0
  %v893 = vadd.f32 %v155, %v892
  %894 = vmatmul.f32.gmra.mxu0 %v483
  %v895 = vpop.f32.mrf.mxu0
  %v896 = vadd.f32 %v155, %v895
  %897 = vmatmul.f32.gmra.mxu0 %v486
  %v898 = vpop.f32.mrf.mxu0
  %v899 = vadd.f32 %v155, %v898
  %900 = vmatmul.f32.gmra.mxu0 %v489
  %v901 = vpop.f32.mrf.mxu0
  %v902 = vadd.f32 %v155, %v901
  %903 = vmatmul.f32.gmra.mxu0 %v492
  %v904 = vpop.f32.mrf.mxu0
  %v905 = vadd.f32 %v155, %v904
  %906 = vmatmul.f32.gmra.mxu0 %v495
  %v907 = vpop.f32.mrf.mxu0
  %v908 = vadd.f32 %v155, %v907
  %909 = vmatmul.f32.gmra.mxu0 %v498
  %v910 = vpop.f32.mrf.mxu0
  %v911 = vadd.f32 %v155, %v910
  %912 = vmatmul.f32.gmra.mxu0 %v501
  %v913 = vpop.f32.mrf.mxu0
  %v914 = vadd.f32 %v155, %v913
  %915 = vmatmul.f32.gmra.mxu0 %v504
  %v916 = vpop.f32.mrf.mxu0
  %v917 = vadd.f32 %v155, %v916
  %918 = vmatmul.f32.gmra.mxu0 %v507
  %v919 = vpop.f32.mrf.mxu0
  %v920 = vadd.f32 %v155, %v919
  %921 = vmatmul.f32.gmra.mxu0 %v510
  %v922 = vpop.f32.mrf.mxu0
  %v923 = vadd.f32 %v155, %v922
  %924 = vmatmul.f32.gmra.mxu0 %v513
  %v925 = vpop.f32.mrf.mxu0
  %v926 = vadd.f32 %v155, %v925
  %927 = vmatmul.f32.gmra.mxu0 %v516
  %v928 = vpop.f32.mrf.mxu0
  %v929 = vadd.f32 %v155, %v928
  %930 = vmatmul.f32.gmra.mxu0 %v519
  %v931 = vpop.f32.mrf.mxu0
  %v932 = vadd.f32 %v155, %v931
  %933 = vmatmul.f32.gmra.mxu0 %v522
  %v934 = vpop.f32.mrf.mxu0
  %v935 = vadd.f32 %v155, %v934
  %936 = vmatmul.f32.gmra.mxu0 %v525
  %v937 = vpop.f32.mrf.mxu0
  %v938 = vadd.f32 %v155, %v937
  %939 = vmatmul.f32.gmra.mxu0 %v528
  %v940 = vpop.f32.mrf.mxu0
  %v941 = vadd.f32 %v155, %v940
  %942 = vmatmul.f32.gmra.mxu0 %v531
  %v943 = vpop.f32.mrf.mxu0
  %v944 = vadd.f32 %v155, %v943
  %945 = vmatmul.f32.gmra.mxu0 %v534
  %v946 = vpop.f32.mrf.mxu0
  %v947 = vadd.f32 %v155, %v946
  %948 = vmatmul.f32.gmra.mxu0 %v537
  %v949 = vpop.f32.mrf.mxu0
  %v950 = vadd.f32 %v155, %v949
  %951 = vmatmul.f32.gmra.mxu0 %v540
  %v952 = vpop.f32.mrf.mxu0
  %v953 = vadd.f32 %v155, %v952
  %954 = vdwg.mxu0
  %v955 = vtanh.pop %v572
  %v956 = vtanh.pop %v575
  %v957 = vtanh.pop %v578
  %v958 = vtanh.pop %v581
  %v959 = vtanh.pop %v584
  %v960 = vtanh.pop %v587
  %v961 = vtanh.pop %v590
  %v962 = vtanh.pop %v593
  %v963 = vtanh.pop %v596
  %v964 = vtanh.pop %v599
  %v965 = vtanh.pop %v602
  %v966 = vtanh.pop %v605
  %v967 = vtanh.pop %v608
  %v968 = vtanh.pop %v611
  %v969 = vtanh.pop %v614
  %v970 = vtanh.pop %v617
  %v971 = vtanh.pop %v620
  %v972 = vtanh.pop %v623
  %v973 = vtanh.pop %v626
  %v974 = vtanh.pop %v629
  %v975 = vtanh.pop %v632
  %v976 = vtanh.pop %v635
  %v977 = vtanh.pop %v638
  %v978 = vtanh.pop %v641
  %v979 = vtanh.pop %v644
  %v980 = vtanh.pop %v647
  %v981 = vtanh.pop %v650
  %v982 = vtanh.pop %v653
  %v983 = vtanh.pop %v656
  %v984 = vtanh.pop %v659
  %v985 = vtanh.pop %v662
  %v986 = vtanh.pop %v665
  %v987 = vtanh.pop %v668
  %v988 = vtanh.pop %v671
  %v989 = vtanh.pop %v674
  %v990 = vtanh.pop %v677
  %v991 = vtanh.pop %v680
  %v992 = vtanh.pop %v683
  %v993 = vtanh.pop %v686
  %v994 = vtanh.pop %v689
  %v995 = vtanh.pop %v692
  %v996 = vtanh.pop %v695
  %v997 = vtanh.pop %v698
  %v998 = vtanh.pop %v701
  %v999 = vtanh.pop %v704
  %v1000 = vtanh.pop %v707
  %v1001 = vtanh.pop %v710
  %v1002 = vtanh.pop %v713
  %v1003 = vtanh.pop %v716
  %v1004 = vtanh.pop %v719
  %v1005 = vtanh.pop %v722
  %v1006 = vtanh.pop %v725
  %v1007 = vtanh.pop %v728
  %v1008 = vtanh.pop %v731
  %v1009 = vtanh.pop %v734
  %v1010 = vtanh.pop %v737
  %v1011 = vtanh.pop %v740
  %v1012 = vtanh.pop %v743
  %v1013 = vtanh.pop %v746
  %v1014 = vtanh.pop %v749
  %v1015 = vtanh.pop %v752
  %v1016 = vtanh.pop %v755
  %v1017 = vtanh.pop %v758
  %v1018 = vtanh.pop %v761
  %v1019 = vtanh.pop %v764
  %v1020 = vtanh.pop %v767
  %v1021 = vtanh.pop %v770
  %v1022 = vtanh.pop %v773
  %v1023 = vtanh.pop %v776
  %v1024 = vtanh.pop %v779
  %v1025 = vtanh.pop %v782
  %v1026 = vtanh.pop %v785
  %v1027 = vtanh.pop %v788
  %v1028 = vtanh.pop %v791
  %v1029 = vtanh.pop %v794
  %v1030 = vtanh.pop %v797
  %v1031 = vtanh.pop %v800
  %v1032 = vtanh.pop %v803
  %v1033 = vtanh.pop %v806
  %v1034 = vtanh.pop %v809
  %v1035 = vtanh.pop %v812
  %v1036 = vtanh.pop %v815
  %v1037 = vtanh.pop %v818
  %v1038 = vtanh.pop %v821
  %v1039 = vtanh.pop %v824
  %v1040 = vtanh.pop %v827
  %v1041 = vtanh.pop %v830
  %v1042 = vtanh.pop %v833
  %v1043 = vtanh.pop %v836
  %v1044 = vtanh.pop %v839
  %v1045 = vtanh.pop %v842
  %v1046 = vtanh.pop %v845
  %v1047 = vtanh.pop %v848
  %v1048 = vtanh.pop %v851
  %v1049 = vtanh.pop %v854
  %v1050 = vtanh.pop %v857
  %v1051 = vtanh.pop %v860
  %v1052 = vtanh.pop %v863
  %v1053 = vtanh.pop %v866
  %v1054 = vtanh.pop %v869
  %v1055 = vtanh.pop %v872
  %v1056 = vtanh.pop %v875
  %v1057 = vtanh.pop %v878
  %v1058 = vtanh.pop %v881
  %v1059 = vtanh.pop %v884
  %v1060 = vtanh.pop %v887
  %v1061 = vtanh.pop %v890
  %v1062 = vtanh.pop %v893
  %v1063 = vtanh.pop %v896
  %v1064 = vtanh.pop %v899
  %v1065 = vtanh.pop %v902
  %v1066 = vtanh.pop %v905
  %v1067 = vtanh.pop %v908
  %v1068 = vtanh.pop %v911
  %v1069 = vtanh.pop %v914
  %v1070 = vtanh.pop %v917
  %v1071 = vtanh.pop %v920
  %v1072 = vtanh.pop %v923
  %v1073 = vtanh.pop %v926
  %v1074 = vtanh.pop %v929
  %v1075 = vtanh.pop %v932
  %v1076 = vtanh.pop %v935
  %v1077 = vtanh.pop %v938
  %v1078 = vtanh.pop %v941
  %v1079 = vtanh.pop %v944
  %v1080 = vtanh.pop %v947
  %v1081 = vtanh.pop %v950
  %v1082 = vtanh.pop %v953
  %v1083 = vld [vmem:[%s3] sm:$0xff]
  %v1085 = vperm.slane %v21, 0
  %vm1087 = vcmask 261120
  %v1089 = vsel %vm1087, %v955, 0
  %v1092 = vsel %vm1087, %v956, 0
  %v1095 = vsel %vm1087, %v957, 0
  %v1098 = vsel %vm1087, %v958, 0
  %v1101 = vsel %vm1087, %v959, 0
  %v1104 = vsel %vm1087, %v960, 0
  %v1107 = vsel %vm1087, %v961, 0
  %v1110 = vsel %vm1087, %v962, 0
  %v1113 = vsel %vm1087, %v963, 0
  %v1116 = vsel %vm1087, %v964, 0
  %v1119 = vsel %vm1087, %v965, 0
  %v1122 = vsel %vm1087, %v966, 0
  %v1125 = vsel %vm1087, %v967, 0
  %v1128 = vsel %vm1087, %v968, 0
  %v1131 = vsel %vm1087, %v969, 0
  %v1134 = vsel %vm1087, %v970, 0
  %v1137 = vsel %vm1087, %v971, 0
  %v1140 = vsel %vm1087, %v972, 0
  %v1143 = vsel %vm1087, %v973, 0
  %v1146 = vsel %vm1087, %v974, 0
  %v1149 = vsel %vm1087, %v975, 0
  %v1152 = vsel %vm1087, %v976, 0
  %v1155 = vsel %vm1087, %v977, 0
  %v1158 = vsel %vm1087, %v978, 0
  %v1161 = vsel %vm1087, %v979, 0
  %v1164 = vsel %vm1087, %v980, 0
  %v1167 = vsel %vm1087, %v981, 0
  %v1170 = vsel %vm1087, %v982, 0
  %v1173 = vsel %vm1087, %v983, 0
  %v1176 = vsel %vm1087, %v984, 0
  %v1179 = vsel %vm1087, %v985, 0
  %v1182 = vsel %vm1087, %v986, 0
  %v1185 = vsel %vm1087, %v987, 0
  %v1188 = vsel %vm1087, %v988, 0
  %v1191 = vsel %vm1087, %v989, 0
  %v1194 = vsel %vm1087, %v990, 0
  %v1197 = vsel %vm1087, %v991, 0
  %v1200 = vsel %vm1087, %v992, 0
  %v1203 = vsel %vm1087, %v993, 0
  %v1206 = vsel %vm1087, %v994, 0
  %v1209 = vsel %vm1087, %v995, 0
  %v1212 = vsel %vm1087, %v996, 0
  %v1215 = vsel %vm1087, %v997, 0
  %v1218 = vsel %vm1087, %v998, 0
  %v1221 = vsel %vm1087, %v999, 0
  %v1224 = vsel %vm1087, %v1000, 0
  %v1227 = vsel %vm1087, %v1001, 0
  %v1230 = vsel %vm1087, %v1002, 0
  %v1233 = vsel %vm1087, %v1003, 0
  %v1236 = vsel %vm1087, %v1004, 0
  %v1239 = vsel %vm1087, %v1005, 0
  %v1242 = vsel %vm1087, %v1006, 0
  %v1245 = vsel %vm1087, %v1007, 0
  %v1248 = vsel %vm1087, %v1008, 0
  %v1251 = vsel %vm1087, %v1009, 0
  %v1254 = vsel %vm1087, %v1010, 0
  %v1257 = vsel %vm1087, %v1011, 0
  %v1260 = vsel %vm1087, %v1012, 0
  %v1263 = vsel %vm1087, %v1013, 0
  %v1266 = vsel %vm1087, %v1014, 0
  %v1269 = vsel %vm1087, %v1015, 0
  %v1272 = vsel %vm1087, %v1016, 0
  %v1275 = vsel %vm1087, %v1017, 0
  %v1278 = vsel %vm1087, %v1018, 0
  %v1281 = vsel %vm1087, %v1019, 0
  %v1284 = vsel %vm1087, %v1020, 0
  %v1287 = vsel %vm1087, %v1021, 0
  %v1290 = vsel %vm1087, %v1022, 0
  %v1293 = vsel %vm1087, %v1023, 0
  %v1296 = vsel %vm1087, %v1024, 0
  %v1299 = vsel %vm1087, %v1025, 0
  %v1302 = vsel %vm1087, %v1026, 0
  %v1305 = vsel %vm1087, %v1027, 0
  %v1308 = vsel %vm1087, %v1028, 0
  %v1311 = vsel %vm1087, %v1029, 0
  %v1314 = vsel %vm1087, %v1030, 0
  %v1317 = vsel %vm1087, %v1031, 0
  %v1320 = vsel %vm1087, %v1032, 0
  %v1323 = vsel %vm1087, %v1033, 0
  %v1326 = vsel %vm1087, %v1034, 0
  %v1329 = vsel %vm1087, %v1035, 0
  %v1332 = vsel %vm1087, %v1036, 0
  %v1335 = vsel %vm1087, %v1037, 0
  %v1338 = vsel %vm1087, %v1038, 0
  %v1341 = vsel %vm1087, %v1039, 0
  %v1344 = vsel %vm1087, %v1040, 0
  %v1347 = vsel %vm1087, %v1041, 0
  %v1350 = vsel %vm1087, %v1042, 0
  %v1353 = vsel %vm1087, %v1043, 0
  %v1356 = vsel %vm1087, %v1044, 0
  %v1359 = vsel %vm1087, %v1045, 0
  %v1362 = vsel %vm1087, %v1046, 0
  %v1365 = vsel %vm1087, %v1047, 0
  %v1368 = vsel %vm1087, %v1048, 0
  %v1371 = vsel %vm1087, %v1049, 0
  %v1374 = vsel %vm1087, %v1050, 0
  %v1377 = vsel %vm1087, %v1051, 0
  %v1380 = vsel %vm1087, %v1052, 0
  %v1383 = vsel %vm1087, %v1053, 0
  %v1386 = vsel %vm1087, %v1054, 0
  %v1389 = vsel %vm1087, %v1055, 0
  %v1392 = vsel %vm1087, %v1056, 0
  %v1395 = vsel %vm1087, %v1057, 0
  %v1398 = vsel %vm1087, %v1058, 0
  %v1401 = vsel %vm1087, %v1059, 0
  %v1404 = vsel %vm1087, %v1060, 0
  %v1407 = vsel %vm1087, %v1061, 0
  %v1410 = vsel %vm1087, %v1062, 0
  %v1413 = vsel %vm1087, %v1063, 0
  %v1416 = vsel %vm1087, %v1064, 0
  %v1419 = vsel %vm1087, %v1065, 0
  %v1422 = vsel %vm1087, %v1066, 0
  %v1425 = vsel %vm1087, %v1067, 0
  %v1428 = vsel %vm1087, %v1068, 0
  %v1431 = vsel %vm1087, %v1069, 0
  %v1434 = vsel %vm1087, %v1070, 0
  %v1437 = vsel %vm1087, %v1071, 0
  %v1440 = vsel %vm1087, %v1072, 0
  %v1443 = vsel %vm1087, %v1073, 0
  %v1446 = vsel %vm1087, %v1074, 0
  %v1449 = vsel %vm1087, %v1075, 0
  %v1452 = vsel %vm1087, %v1076, 0
  %v1455 = vsel %vm1087, %v1077, 0
  %v1458 = vsel %vm1087, %v1078, 0
  %v1461 = vsel %vm1087, %v1079, 0
  %v1464 = vsel %vm1087, %v1080, 0
  %v1467 = vsel %vm1087, %v1081, 0
  %v1470 = vsel %vm1087, %v1082, 0
  %v1473 = vsel %vm1087, %v1083, 0
  %1475 = vmatpush.xpose.msra.mxu0 0.0
  %1476 = vmatpush.xpose.msra.mxu0 0.0
  %1477 = vmatpush.xpose.msra.mxu0 0.0
  %1478 = vmatpush.xpose.msra.mxu0 0.0
  %1479 = vmatpush.xpose.msra.mxu0 0.0
  %1480 = vmatpush.xpose.msra.mxu0 0.0
  %1481 = vmatpush.xpose.msra.mxu0 0.0
  %1482 = vmatpush.xpose.msra.mxu0 0.0
  %1483 = vmatpush.xpose.msra.mxu0 0.0
  %1484 = vmatpush.xpose.msra.mxu0 0.0
  %1485 = vmatpush.xpose.msra.mxu0 0.0
  %1486 = vmatpush.xpose.msra.mxu0 0.0
  %1487 = vmatpush.xpose.msra.mxu0 0.0
  %1488 = vmatpush.xpose.msra.mxu0 0.0
  %1489 = vmatpush.xpose.msra.mxu0 0.0
  %1490 = vmatpush.xpose.msra.mxu0 %v1473
  %1491 = vmatmul.f32.gmra.mxu0 %v1089
  %v1492 = vpop.f32.mrf.mxu0
  %v1493 = vadd.f32 %v1085, %v1492
  %1494 = vmatmul.f32.gmra.mxu0 %v1092
  %v1495 = vpop.f32.mrf.mxu0
  %v1496 = vadd.f32 %v1085, %v1495
  %1497 = vmatmul.f32.gmra.mxu0 %v1095
  %v1498 = vpop.f32.mrf.mxu0
  %v1499 = vadd.f32 %v1085, %v1498
  %1500 = vmatmul.f32.gmra.mxu0 %v1098
  %v1501 = vpop.f32.mrf.mxu0
  %v1502 = vadd.f32 %v1085, %v1501
  %1503 = vmatmul.f32.gmra.mxu0 %v1101
  %v1504 = vpop.f32.mrf.mxu0
  %v1505 = vadd.f32 %v1085, %v1504
  %1506 = vmatmul.f32.gmra.mxu0 %v1104
  %v1507 = vpop.f32.mrf.mxu0
  %v1508 = vadd.f32 %v1085, %v1507
  %1509 = vmatmul.f32.gmra.mxu0 %v1107
  %v1510 = vpop.f32.mrf.mxu0
  %v1511 = vadd.f32 %v1085, %v1510
  %1512 = vmatmul.f32.gmra.mxu0 %v1110
  %v1513 = vpop.f32.mrf.mxu0
  %v1514 = vadd.f32 %v1085, %v1513
  %1515 = vmatmul.f32.gmra.mxu0 %v1113
  %v1516 = vpop.f32.mrf.mxu0
  %v1517 = vadd.f32 %v1085, %v1516
  %1518 = vmatmul.f32.gmra.mxu0 %v1116
  %v1519 = vpop.f32.mrf.mxu0
  %v1520 = vadd.f32 %v1085, %v1519
  %1521 = vmatmul.f32.gmra.mxu0 %v1119
  %v1522 = vpop.f32.mrf.mxu0
  %v1523 = vadd.f32 %v1085, %v1522
  %1524 = vmatmul.f32.gmra.mxu0 %v1122
  %v1525 = vpop.f32.mrf.mxu0
  %v1526 = vadd.f32 %v1085, %v1525
  %1527 = vmatmul.f32.gmra.mxu0 %v1125
  %v1528 = vpop.f32.mrf.mxu0
  %v1529 = vadd.f32 %v1085, %v1528
  %1530 = vmatmul.f32.gmra.mxu0 %v1128
  %v1531 = vpop.f32.mrf.mxu0
  %v1532 = vadd.f32 %v1085, %v1531
  %1533 = vmatmul.f32.gmra.mxu0 %v1131
  %v1534 = vpop.f32.mrf.mxu0
  %v1535 = vadd.f32 %v1085, %v1534
  %1536 = vmatmul.f32.gmra.mxu0 %v1134
  %v1537 = vpop.f32.mrf.mxu0
  %v1538 = vadd.f32 %v1085, %v1537
  %1539 = vmatmul.f32.gmra.mxu0 %v1137
  %v1540 = vpop.f32.mrf.mxu0
  %v1541 = vadd.f32 %v1085, %v1540
  %1542 = vmatmul.f32.gmra.mxu0 %v1140
  %v1543 = vpop.f32.mrf.mxu0
  %v1544 = vadd.f32 %v1085, %v1543
  %1545 = vmatmul.f32.gmra.mxu0 %v1143
  %v1546 = vpop.f32.mrf.mxu0
  %v1547 = vadd.f32 %v1085, %v1546
  %1548 = vmatmul.f32.gmra.mxu0 %v1146
  %v1549 = vpop.f32.mrf.mxu0
  %v1550 = vadd.f32 %v1085, %v1549
  %1551 = vmatmul.f32.gmra.mxu0 %v1149
  %v1552 = vpop.f32.mrf.mxu0
  %v1553 = vadd.f32 %v1085, %v1552
  %1554 = vmatmul.f32.gmra.mxu0 %v1152
  %v1555 = vpop.f32.mrf.mxu0
  %v1556 = vadd.f32 %v1085, %v1555
  %1557 = vmatmul.f32.gmra.mxu0 %v1155
  %v1558 = vpop.f32.mrf.mxu0
  %v1559 = vadd.f32 %v1085, %v1558
  %1560 = vmatmul.f32.gmra.mxu0 %v1158
  %v1561 = vpop.f32.mrf.mxu0
  %v1562 = vadd.f32 %v1085, %v1561
  %1563 = vmatmul.f32.gmra.mxu0 %v1161
  %v1564 = vpop.f32.mrf.mxu0
  %v1565 = vadd.f32 %v1085, %v1564
  %1566 = vmatmul.f32.gmra.mxu0 %v1164
  %v1567 = vpop.f32.mrf.mxu0
  %v1568 = vadd.f32 %v1085, %v1567
  %1569 = vmatmul.f32.gmra.mxu0 %v1167
  %v1570 = vpop.f32.mrf.mxu0
  %v1571 = vadd.f32 %v1085, %v1570
  %1572 = vmatmul.f32.gmra.mxu0 %v1170
  %v1573 = vpop.f32.mrf.mxu0
  %v1574 = vadd.f32 %v1085, %v1573
  %1575 = vmatmul.f32.gmra.mxu0 %v1173
  %v1576 = vpop.f32.mrf.mxu0
  %v1577 = vadd.f32 %v1085, %v1576
  %1578 = vmatmul.f32.gmra.mxu0 %v1176
  %v1579 = vpop.f32.mrf.mxu0
  %v1580 = vadd.f32 %v1085, %v1579
  %1581 = vmatmul.f32.gmra.mxu0 %v1179
  %v1582 = vpop.f32.mrf.mxu0
  %v1583 = vadd.f32 %v1085, %v1582
  %1584 = vmatmul.f32.gmra.mxu0 %v1182
  %v1585 = vpop.f32.mrf.mxu0
  %v1586 = vadd.f32 %v1085, %v1585
  %1587 = vmatmul.f32.gmra.mxu0 %v1185
  %v1588 = vpop.f32.mrf.mxu0
  %v1589 = vadd.f32 %v1085, %v1588
  %1590 = vmatmul.f32.gmra.mxu0 %v1188
  %v1591 = vpop.f32.mrf.mxu0
  %v1592 = vadd.f32 %v1085, %v1591
  %1593 = vmatmul.f32.gmra.mxu0 %v1191
  %v1594 = vpop.f32.mrf.mxu0
  %v1595 = vadd.f32 %v1085, %v1594
  %1596 = vmatmul.f32.gmra.mxu0 %v1194
  %v1597 = vpop.f32.mrf.mxu0
  %v1598 = vadd.f32 %v1085, %v1597
  %1599 = vmatmul.f32.gmra.mxu0 %v1197
  %v1600 = vpop.f32.mrf.mxu0
  %v1601 = vadd.f32 %v1085, %v1600
  %1602 = vmatmul.f32.gmra.mxu0 %v1200
  %v1603 = vpop.f32.mrf.mxu0
  %v1604 = vadd.f32 %v1085, %v1603
  %1605 = vmatmul.f32.gmra.mxu0 %v1203
  %v1606 = vpop.f32.mrf.mxu0
  %v1607 = vadd.f32 %v1085, %v1606
  %1608 = vmatmul.f32.gmra.mxu0 %v1206
  %v1609 = vpop.f32.mrf.mxu0
  %v1610 = vadd.f32 %v1085, %v1609
  %1611 = vmatmul.f32.gmra.mxu0 %v1209
  %v1612 = vpop.f32.mrf.mxu0
  %v1613 = vadd.f32 %v1085, %v1612
  %1614 = vmatmul.f32.gmra.mxu0 %v1212
  %v1615 = vpop.f32.mrf.mxu0
  %v1616 = vadd.f32 %v1085, %v1615
  %1617 = vmatmul.f32.gmra.mxu0 %v1215
  %v1618 = vpop.f32.mrf.mxu0
  %v1619 = vadd.f32 %v1085, %v1618
  %1620 = vmatmul.f32.gmra.mxu0 %v1218
  %v1621 = vpop.f32.mrf.mxu0
  %v1622 = vadd.f32 %v1085, %v1621
  %1623 = vmatmul.f32.gmra.mxu0 %v1221
  %v1624 = vpop.f32.mrf.mxu0
  %v1625 = vadd.f32 %v1085, %v1624
  %1626 = vmatmul.f32.gmra.mxu0 %v1224
  %v1627 = vpop.f32.mrf.mxu0
  %v1628 = vadd.f32 %v1085, %v1627
  %1629 = vmatmul.f32.gmra.mxu0 %v1227
  %v1630 = vpop.f32.mrf.mxu0
  %v1631 = vadd.f32 %v1085, %v1630
  %1632 = vmatmul.f32.gmra.mxu0 %v1230
  %v1633 = vpop.f32.mrf.mxu0
  %v1634 = vadd.f32 %v1085, %v1633
  %1635 = vmatmul.f32.gmra.mxu0 %v1233
  %v1636 = vpop.f32.mrf.mxu0
  %v1637 = vadd.f32 %v1085, %v1636
  %1638 = vmatmul.f32.gmra.mxu0 %v1236
  %v1639 = vpop.f32.mrf.mxu0
  %v1640 = vadd.f32 %v1085, %v1639
  %1641 = vmatmul.f32.gmra.mxu0 %v1239
  %v1642 = vpop.f32.mrf.mxu0
  %v1643 = vadd.f32 %v1085, %v1642
  %1644 = vmatmul.f32.gmra.mxu0 %v1242
  %v1645 = vpop.f32.mrf.mxu0
  %v1646 = vadd.f32 %v1085, %v1645
  %1647 = vmatmul.f32.gmra.mxu0 %v1245
  %v1648 = vpop.f32.mrf.mxu0
  %v1649 = vadd.f32 %v1085, %v1648
  %1650 = vmatmul.f32.gmra.mxu0 %v1248
  %v1651 = vpop.f32.mrf.mxu0
  %v1652 = vadd.f32 %v1085, %v1651
  %1653 = vmatmul.f32.gmra.mxu0 %v1251
  %v1654 = vpop.f32.mrf.mxu0
  %v1655 = vadd.f32 %v1085, %v1654
  %1656 = vmatmul.f32.gmra.mxu0 %v1254
  %v1657 = vpop.f32.mrf.mxu0
  %v1658 = vadd.f32 %v1085, %v1657
  %1659 = vmatmul.f32.gmra.mxu0 %v1257
  %v1660 = vpop.f32.mrf.mxu0
  %v1661 = vadd.f32 %v1085, %v1660
  %1662 = vmatmul.f32.gmra.mxu0 %v1260
  %v1663 = vpop.f32.mrf.mxu0
  %v1664 = vadd.f32 %v1085, %v1663
  %1665 = vmatmul.f32.gmra.mxu0 %v1263
  %v1666 = vpop.f32.mrf.mxu0
  %v1667 = vadd.f32 %v1085, %v1666
  %1668 = vmatmul.f32.gmra.mxu0 %v1266
  %v1669 = vpop.f32.mrf.mxu0
  %v1670 = vadd.f32 %v1085, %v1669
  %1671 = vmatmul.f32.gmra.mxu0 %v1269
  %v1672 = vpop.f32.mrf.mxu0
  %v1673 = vadd.f32 %v1085, %v1672
  %1674 = vmatmul.f32.gmra.mxu0 %v1272
  %v1675 = vpop.f32.mrf.mxu0
  %v1676 = vadd.f32 %v1085, %v1675
  %1677 = vmatmul.f32.gmra.mxu0 %v1275
  %v1678 = vpop.f32.mrf.mxu0
  %v1679 = vadd.f32 %v1085, %v1678
  %1680 = vmatmul.f32.gmra.mxu0 %v1278
  %v1681 = vpop.f32.mrf.mxu0
  %v1682 = vadd.f32 %v1085, %v1681
  %1683 = vmatmul.f32.gmra.mxu0 %v1281
  %v1684 = vpop.f32.mrf.mxu0
  %v1685 = vadd.f32 %v1085, %v1684
  %1686 = vmatmul.f32.gmra.mxu0 %v1284
  %v1687 = vpop.f32.mrf.mxu0
  %v1688 = vadd.f32 %v1085, %v1687
  %1689 = vmatmul.f32.gmra.mxu0 %v1287
  %v1690 = vpop.f32.mrf.mxu0
  %v1691 = vadd.f32 %v1085, %v1690
  %1692 = vmatmul.f32.gmra.mxu0 %v1290
  %v1693 = vpop.f32.mrf.mxu0
  %v1694 = vadd.f32 %v1085, %v1693
  %1695 = vmatmul.f32.gmra.mxu0 %v1293
  %v1696 = vpop.f32.mrf.mxu0
  %v1697 = vadd.f32 %v1085, %v1696
  %1698 = vmatmul.f32.gmra.mxu0 %v1296
  %v1699 = vpop.f32.mrf.mxu0
  %v1700 = vadd.f32 %v1085, %v1699
  %1701 = vmatmul.f32.gmra.mxu0 %v1299
  %v1702 = vpop.f32.mrf.mxu0
  %v1703 = vadd.f32 %v1085, %v1702
  %1704 = vmatmul.f32.gmra.mxu0 %v1302
  %v1705 = vpop.f32.mrf.mxu0
  %v1706 = vadd.f32 %v1085, %v1705
  %1707 = vmatmul.f32.gmra.mxu0 %v1305
  %v1708 = vpop.f32.mrf.mxu0
  %v1709 = vadd.f32 %v1085, %v1708
  %1710 = vmatmul.f32.gmra.mxu0 %v1308
  %v1711 = vpop.f32.mrf.mxu0
  %v1712 = vadd.f32 %v1085, %v1711
  %1713 = vmatmul.f32.gmra.mxu0 %v1311
  %v1714 = vpop.f32.mrf.mxu0
  %v1715 = vadd.f32 %v1085, %v1714
  %1716 = vmatmul.f32.gmra.mxu0 %v1314
  %v1717 = vpop.f32.mrf.mxu0
  %v1718 = vadd.f32 %v1085, %v1717
  %1719 = vmatmul.f32.gmra.mxu0 %v1317
  %v1720 = vpop.f32.mrf.mxu0
  %v1721 = vadd.f32 %v1085, %v1720
  %1722 = vmatmul.f32.gmra.mxu0 %v1320
  %v1723 = vpop.f32.mrf.mxu0
  %v1724 = vadd.f32 %v1085, %v1723
  %1725 = vmatmul.f32.gmra.mxu0 %v1323
  %v1726 = vpop.f32.mrf.mxu0
  %v1727 = vadd.f32 %v1085, %v1726
  %1728 = vmatmul.f32.gmra.mxu0 %v1326
  %v1729 = vpop.f32.mrf.mxu0
  %v1730 = vadd.f32 %v1085, %v1729
  %1731 = vmatmul.f32.gmra.mxu0 %v1329
  %v1732 = vpop.f32.mrf.mxu0
  %v1733 = vadd.f32 %v1085, %v1732
  %1734 = vmatmul.f32.gmra.mxu0 %v1332
  %v1735 = vpop.f32.mrf.mxu0
  %v1736 = vadd.f32 %v1085, %v1735
  %1737 = vmatmul.f32.gmra.mxu0 %v1335
  %v1738 = vpop.f32.mrf.mxu0
  %v1739 = vadd.f32 %v1085, %v1738
  %1740 = vmatmul.f32.gmra.mxu0 %v1338
  %v1741 = vpop.f32.mrf.mxu0
  %v1742 = vadd.f32 %v1085, %v1741
  %1743 = vmatmul.f32.gmra.mxu0 %v1341
  %v1744 = vpop.f32.mrf.mxu0
  %v1745 = vadd.f32 %v1085, %v1744
  %1746 = vmatmul.f32.gmra.mxu0 %v1344
  %v1747 = vpop.f32.mrf.mxu0
  %v1748 = vadd.f32 %v1085, %v1747
  %1749 = vmatmul.f32.gmra.mxu0 %v1347
  %v1750 = vpop.f32.mrf.mxu0
  %v1751 = vadd.f32 %v1085, %v1750
  %1752 = vmatmul.f32.gmra.mxu0 %v1350
  %v1753 = vpop.f32.mrf.mxu0
  %v1754 = vadd.f32 %v1085, %v1753
  %1755 = vmatmul.f32.gmra.mxu0 %v1353
  %v1756 = vpop.f32.mrf.mxu0
  %v1757 = vadd.f32 %v1085, %v1756
  %1758 = vmatmul.f32.gmra.mxu0 %v1356
  %v1759 = vpop.f32.mrf.mxu0
  %v1760 = vadd.f32 %v1085, %v1759
  %1761 = vmatmul.f32.gmra.mxu0 %v1359
  %v1762 = vpop.f32.mrf.mxu0
  %v1763 = vadd.f32 %v1085, %v1762
  %1764 = vmatmul.f32.gmra.mxu0 %v1362
  %v1765 = vpop.f32.mrf.mxu0
  %v1766 = vadd.f32 %v1085, %v1765
  %1767 = vmatmul.f32.gmra.mxu0 %v1365
  %v1768 = vpop.f32.mrf.mxu0
  %v1769 = vadd.f32 %v1085, %v1768
  %1770 = vmatmul.f32.gmra.mxu0 %v1368
  %v1771 = vpop.f32.mrf.mxu0
  %v1772 = vadd.f32 %v1085, %v1771
  %1773 = vmatmul.f32.gmra.mxu0 %v1371
  %v1774 = vpop.f32.mrf.mxu0
  %v1775 = vadd.f32 %v1085, %v1774
  %1776 = vmatmul.f32.gmra.mxu0 %v1374
  %v1777 = vpop.f32.mrf.mxu0
  %v1778 = vadd.f32 %v1085, %v1777
  %1779 = vmatmul.f32.gmra.mxu0 %v1377
  %v1780 = vpop.f32.mrf.mxu0
  %v1781 = vadd.f32 %v1085, %v1780
  %1782 = vmatmul.f32.gmra.mxu0 %v1380
  %v1783 = vpop.f32.mrf.mxu0
  %v1784 = vadd.f32 %v1085, %v1783
  %1785 = vmatmul.f32.gmra.mxu0 %v1383
  %v1786 = vpop.f32.mrf.mxu0
  %v1787 = vadd.f32 %v1085, %v1786
  %1788 = vmatmul.f32.gmra.mxu0 %v1386
  %v1789 = vpop.f32.mrf.mxu0
  %v1790 = vadd.f32 %v1085, %v1789
  %1791 = vmatmul.f32.gmra.mxu0 %v1389
  %v1792 = vpop.f32.mrf.mxu0
  %v1793 = vadd.f32 %v1085, %v1792
  %1794 = vmatmul.f32.gmra.mxu0 %v1392
  %v1795 = vpop.f32.mrf.mxu0
  %v1796 = vadd.f32 %v1085, %v1795
  %1797 = vmatmul.f32.gmra.mxu0 %v1395
  %v1798 = vpop.f32.mrf.mxu0
  %v1799 = vadd.f32 %v1085, %v1798
  %1800 = vmatmul.f32.gmra.mxu0 %v1398
  %v1801 = vpop.f32.mrf.mxu0
  %v1802 = vadd.f32 %v1085, %v1801
  %1803 = vmatmul.f32.gmra.mxu0 %v1401
  %v1804 = vpop.f32.mrf.mxu0
  %v1805 = vadd.f32 %v1085, %v1804
  %1806 = vmatmul.f32.gmra.mxu0 %v1404
  %v1807 = vpop.f32.mrf.mxu0
  %v1808 = vadd.f32 %v1085, %v1807
  %1809 = vmatmul.f32.gmra.mxu0 %v1407
  %v1810 = vpop.f32.mrf.mxu0
  %v1811 = vadd.f32 %v1085, %v1810
  %1812 = vmatmul.f32.gmra.mxu0 %v1410
  %v1813 = vpop.f32.mrf.mxu0
  %v1814 = vadd.f32 %v1085, %v1813
  %1815 = vmatmul.f32.gmra.mxu0 %v1413
  %v1816 = vpop.f32.mrf.mxu0
  %v1817 = vadd.f32 %v1085, %v1816
  %1818 = vmatmul.f32.gmra.mxu0 %v1416
  %v1819 = vpop.f32.mrf.mxu0
  %v1820 = vadd.f32 %v1085, %v1819
  %1821 = vmatmul.f32.gmra.mxu0 %v1419
  %v1822 = vpop.f32.mrf.mxu0
  %v1823 = vadd.f32 %v1085, %v1822
  %1824 = vmatmul.f32.gmra.mxu0 %v1422
  %v1825 = vpop.f32.mrf.mxu0
  %v1826 = vadd.f32 %v1085, %v1825
  %1827 = vmatmul.f32.gmra.mxu0 %v1425
  %v1828 = vpop.f32.mrf.mxu0
  %v1829 = vadd.f32 %v1085, %v1828
  %1830 = vmatmul.f32.gmra.mxu0 %v1428
  %v1831 = vpop.f32.mrf.mxu0
  %v1832 = vadd.f32 %v1085, %v1831
  %1833 = vmatmul.f32.gmra.mxu0 %v1431
  %v1834 = vpop.f32.mrf.mxu0
  %v1835 = vadd.f32 %v1085, %v1834
  %1836 = vmatmul.f32.gmra.mxu0 %v1434
  %v1837 = vpop.f32.mrf.mxu0
  %v1838 = vadd.f32 %v1085, %v1837
  %1839 = vmatmul.f32.gmra.mxu0 %v1437
  %v1840 = vpop.f32.mrf.mxu0
  %v1841 = vadd.f32 %v1085, %v1840
  %1842 = vmatmul.f32.gmra.mxu0 %v1440
  %v1843 = vpop.f32.mrf.mxu0
  %v1844 = vadd.f32 %v1085, %v1843
  %1845 = vmatmul.f32.gmra.mxu0 %v1443
  %v1846 = vpop.f32.mrf.mxu0
  %v1847 = vadd.f32 %v1085, %v1846
  %1848 = vmatmul.f32.gmra.mxu0 %v1446
  %v1849 = vpop.f32.mrf.mxu0
  %v1850 = vadd.f32 %v1085, %v1849
  %1851 = vmatmul.f32.gmra.mxu0 %v1449
  %v1852 = vpop.f32.mrf.mxu0
  %v1853 = vadd.f32 %v1085, %v1852
  %1854 = vmatmul.f32.gmra.mxu0 %v1452
  %v1855 = vpop.f32.mrf.mxu0
  %v1856 = vadd.f32 %v1085, %v1855
  %1857 = vmatmul.f32.gmra.mxu0 %v1455
  %v1858 = vpop.f32.mrf.mxu0
  %v1859 = vadd.f32 %v1085, %v1858
  %1860 = vmatmul.f32.gmra.mxu0 %v1458
  %v1861 = vpop.f32.mrf.mxu0
  %v1862 = vadd.f32 %v1085, %v1861
  %1863 = vmatmul.f32.gmra.mxu0 %v1461
  %v1864 = vpop.f32.mrf.mxu0
  %v1865 = vadd.f32 %v1085, %v1864
  %1866 = vmatmul.f32.gmra.mxu0 %v1464
  %v1867 = vpop.f32.mrf.mxu0
  %v1868 = vadd.f32 %v1085, %v1867
  %1869 = vmatmul.f32.gmra.mxu0 %v1467
  %v1870 = vpop.f32.mrf.mxu0
  %v1871 = vadd.f32 %v1085, %v1870
  %1872 = vmatmul.f32.gmra.mxu0 %v1470
  %v1873 = vpop.f32.mrf.mxu0
  %v1874 = vadd.f32 %v1085, %v1873
  %1875 = vdwg.mxu0
  %v1876 = vmax.f32 %v1493, 0.0
  %v1877 = vmax.f32 %v1496, 0.0
  %v1878 = vmax.f32 %v1499, 0.0
  %v1879 = vmax.f32 %v1502, 0.0
  %v1880 = vmax.f32 %v1505, 0.0
  %v1881 = vmax.f32 %v1508, 0.0
  %v1882 = vmax.f32 %v1511, 0.0
  %v1883 = vmax.f32 %v1514, 0.0
  %v1884 = vmax.f32 %v1517, 0.0
  %v1885 = vmax.f32 %v1520, 0.0
  %v1886 = vmax.f32 %v1523, 0.0
  %v1887 = vmax.f32 %v1526, 0.0
  %v1888 = vmax.f32 %v1529, 0.0
  %v1889 = vmax.f32 %v1532, 0.0
  %v1890 = vmax.f32 %v1535, 0.0
  %v1891 = vmax.f32 %v1538, 0.0
  %v1892 = vmax.f32 %v1541, 0.0
  %v1893 = vmax.f32 %v1544, 0.0
  %v1894 = vmax.f32 %v1547, 0.0
  %v1895 = vmax.f32 %v1550, 0.0
  %v1896 = vmax.f32 %v1553, 0.0
  %v1897 = vmax.f32 %v1556, 0.0
  %v1898 = vmax.f32 %v1559, 0.0
  %v1899 = vmax.f32 %v1562, 0.0
  %v1900 = vmax.f32 %v1565, 0.0
  %v1901 = vmax.f32 %v1568, 0.0
  %v1902 = vmax.f32 %v1571, 0.0
  %v1903 = vmax.f32 %v1574, 0.0
  %v1904 = vmax.f32 %v1577, 0.0
  %v1905 = vmax.f32 %v1580, 0.0
  %v1906 = vmax.f32 %v1583, 0.0
  %v1907 = vmax.f32 %v1586, 0.0
  %v1908 = vmax.f32 %v1589, 0.0
  %v1909 = vmax.f32 %v1592, 0.0
  %v1910 = vmax.f32 %v1595, 0.0
  %v1911 = vmax.f32 %v1598, 0.0
  %v1912 = vmax.f32 %v1601, 0.0
  %v1913 = vmax.f32 %v1604, 0.0
  %v1914 = vmax.f32 %v1607, 0.0
  %v1915 = vmax.f32 %v1610, 0.0
  %v1916 = vmax.f32 %v1613, 0.0
  %v1917 = vmax.f32 %v1616, 0.0
  %v1918 = vmax.f32 %v1619, 0.0
  %v1919 = vmax.f32 %v1622, 0.0
  %v1920 = vmax.f32 %v1625, 0.0
  %v1921 = vmax.f32 %v1628, 0.0
  %v1922 = vmax.f32 %v1631, 0.0
  %v1923 = vmax.f32 %v1634, 0.0
  %v1924 = vmax.f32 %v1637, 0.0
  %v1925 = vmax.f32 %v1640, 0.0
  %v1926 = vmax.f32 %v1643, 0.0
  %v1927 = vmax.f32 %v1646, 0.0
  %v1928 = vmax.f32 %v1649, 0.0
  %v1929 = vmax.f32 %v1652, 0.0
  %v1930 = vmax.f32 %v1655, 0.0
  %v1931 = vmax.f32 %v1658, 0.0
  %v1932 = vmax.f32 %v1661, 0.0
  %v1933 = vmax.f32 %v1664, 0.0
  %v1934 = vmax.f32 %v1667, 0.0
  %v1935 = vmax.f32 %v1670, 0.0
  %v1936 = vmax.f32 %v1673, 0.0
  %v1937 = vmax.f32 %v1676, 0.0
  %v1938 = vmax.f32 %v1679, 0.0
  %v1939 = vmax.f32 %v1682, 0.0
  %v1940 = vmax.f32 %v1685, 0.0
  %v1941 = vmax.f32 %v1688, 0.0
  %v1942 = vmax.f32 %v1691, 0.0
  %v1943 = vmax.f32 %v1694, 0.0
  %v1944 = vmax.f32 %v1697, 0.0
  %v1945 = vmax.f32 %v1700, 0.0
  %v1946 = vmax.f32 %v1703, 0.0
  %v1947 = vmax.f32 %v1706, 0.0
  %v1948 = vmax.f32 %v1709, 0.0
  %v1949 = vmax.f32 %v1712, 0.0
  %v1950 = vmax.f32 %v1715, 0.0
  %v1951 = vmax.f32 %v1718, 0.0
  %v1952 = vmax.f32 %v1721, 0.0
  %v1953 = vmax.f32 %v1724, 0.0
  %v1954 = vmax.f32 %v1727, 0.0
  %v1955 = vmax.f32 %v1730, 0.0
  %v1956 = vmax.f32 %v1733, 0.0
  %v1957 = vmax.f32 %v1736, 0.0
  %v1958 = vmax.f32 %v1739, 0.0
  %v1959 = vmax.f32 %v1742, 0.0
  %v1960 = vmax.f32 %v1745, 0.0
  %v1961 = vmax.f32 %v1748, 0.0
  %v1962 = vmax.f32 %v1751, 0.0
  %v1963 = vmax.f32 %v1754, 0.0
  %v1964 = vmax.f32 %v1757, 0.0
  %v1965 = vmax.f32 %v1760, 0.0
  %v1966 = vmax.f32 %v1763, 0.0
  %v1967 = vmax.f32 %v1766, 0.0
  %v1968 = vmax.f32 %v1769, 0.0
  %v1969 = vmax.f32 %v1772, 0.0
  %v1970 = vmax.f32 %v1775, 0.0
  %v1971 = vmax.f32 %v1778, 0.0
  %v1972 = vmax.f32 %v1781, 0.0
  %v1973 = vmax.f32 %v1784, 0.0
  %v1974 = vmax.f32 %v1787, 0.0
  %v1975 = vmax.f32 %v1790, 0.0
  %v1976 = vmax.f32 %v1793, 0.0
  %v1977 = vmax.f32 %v1796, 0.0
  %v1978 = vmax.f32 %v1799, 0.0
  %v1979 = vmax.f32 %v1802, 0.0
  %v1980 = vmax.f32 %v1805, 0.0
  %v1981 = vmax.f32 %v1808, 0.0
  %v1982 = vmax.f32 %v1811, 0.0
  %v1983 = vmax.f32 %v1814, 0.0
  %v1984 = vmax.f32 %v1817, 0.0
  %v1985 = vmax.f32 %v1820, 0.0
  %v1986 = vmax.f32 %v1823, 0.0
  %v1987 = vmax.f32 %v1826, 0.0
  %v1988 = vmax.f32 %v1829, 0.0
  %v1989 = vmax.f32 %v1832, 0.0
  %v1990 = vmax.f32 %v1835, 0.0
  %v1991 = vmax.f32 %v1838, 0.0
  %v1992 = vmax.f32 %v1841, 0.0
  %v1993 = vmax.f32 %v1844, 0.0
  %v1994 = vmax.f32 %v1847, 0.0
  %v1995 = vmax.f32 %v1850, 0.0
  %v1996 = vmax.f32 %v1853, 0.0
  %v1997 = vmax.f32 %v1856, 0.0
  %v1998 = vmax.f32 %v1859, 0.0
  %v1999 = vmax.f32 %v1862, 0.0
  %v2000 = vmax.f32 %v1865, 0.0
  %v2001 = vmax.f32 %v1868, 0.0
  %v2002 = vmax.f32 %v1871, 0.0
  %v2003 = vmax.f32 %v1874, 0.0
  %v2004 = vadd.f32 %v1876, 0.001
  %v2005 = vadd.f32 %v1877, 0.001
  %v2006 = vadd.f32 %v1878, 0.001
  %v2007 = vadd.f32 %v1879, 0.001
  %v2008 = vadd.f32 %v1880, 0.001
  %v2009 = vadd.f32 %v1881, 0.001
  %v2010 = vadd.f32 %v1882, 0.001
  %v2011 = vadd.f32 %v1883, 0.001
  %v2012 = vadd.f32 %v1884, 0.001
  %v2013 = vadd.f32 %v1885, 0.001
  %v2014 = vadd.f32 %v1886, 0.001
  %v2015 = vadd.f32 %v1887, 0.001
  %v2016 = vadd.f32 %v1888, 0.001
  %v2017 = vadd.f32 %v1889, 0.001
  %v2018 = vadd.f32 %v1890, 0.001
  %v2019 = vadd.f32 %v1891, 0.001
  %v2020 = vadd.f32 %v1892, 0.001
  %v2021 = vadd.f32 %v1893, 0.001
  %v2022 = vadd.f32 %v1894, 0.001
  %v2023 = vadd.f32 %v1895, 0.001
  %v2024 = vadd.f32 %v1896, 0.001
  %v2025 = vadd.f32 %v1897, 0.001
  %v2026 = vadd.f32 %v1898, 0.001
  %v2027 = vadd.f32 %v1899, 0.001
  %v2028 = vadd.f32 %v1900, 0.001
  %v2029 = vadd.f32 %v1901, 0.001
  %v2030 = vadd.f32 %v1902, 0.001
  %v2031 = vadd.f32 %v1903, 0.001
  %v2032 = vadd.f32 %v1904, 0.001
  %v2033 = vadd.f32 %v1905, 0.001
  %v2034 = vadd.f32 %v1906, 0.001
  %v2035 = vadd.f32 %v1907, 0.001
  %v2036 = vadd.f32 %v1908, 0.001
  %v2037 = vadd.f32 %v1909, 0.001
  %v2038 = vadd.f32 %v1910, 0.001
  %v2039 = vadd.f32 %v1911, 0.001
  %v2040 = vadd.f32 %v1912, 0.001
  %v2041 = vadd.f32 %v1913, 0.001
  %v2042 = vadd.f32 %v1914, 0.001
  %v2043 = vadd.f32 %v1915, 0.001
  %v2044 = vadd.f32 %v1916, 0.001
  %v2045 = vadd.f32 %v1917, 0.001
  %v2046 = vadd.f32 %v1918, 0.001
  %v2047 = vadd.f32 %v1919, 0.001
  %v2048 = vadd.f32 %v1920, 0.001
  %v2049 = vadd.f32 %v1921, 0.001
  %v2050 = vadd.f32 %v1922, 0.001
  %v2051 = vadd.f32 %v1923, 0.001
  %v2052 = vadd.f32 %v1924, 0.001
  %v2053 = vadd.f32 %v1925, 0.001
  %v2054 = vadd.f32 %v1926, 0.001
  %v2055 = vadd.f32 %v1927, 0.001
  %v2056 = vadd.f32 %v1928, 0.001
  %v2057 = vadd.f32 %v1929, 0.001
  %v2058 = vadd.f32 %v1930, 0.001
  %v2059 = vadd.f32 %v1931, 0.001
  %v2060 = vadd.f32 %v1932, 0.001
  %v2061 = vadd.f32 %v1933, 0.001
  %v2062 = vadd.f32 %v1934, 0.001
  %v2063 = vadd.f32 %v1935, 0.001
  %v2064 = vadd.f32 %v1936, 0.001
  %v2065 = vadd.f32 %v1937, 0.001
  %v2066 = vadd.f32 %v1938, 0.001
  %v2067 = vadd.f32 %v1939, 0.001
  %v2068 = vadd.f32 %v1940, 0.001
  %v2069 = vadd.f32 %v1941, 0.001
  %v2070 = vadd.f32 %v1942, 0.001
  %v2071 = vadd.f32 %v1943, 0.001
  %v2072 = vadd.f32 %v1944, 0.001
  %v2073 = vadd.f32 %v1945, 0.001
  %v2074 = vadd.f32 %v1946, 0.001
  %v2075 = vadd.f32 %v1947, 0.001
  %v2076 = vadd.f32 %v1948, 0.001
  %v2077 = vadd.f32 %v1949, 0.001
  %v2078 = vadd.f32 %v1950, 0.001
  %v2079 = vadd.f32 %v1951, 0.001
  %v2080 = vadd.f32 %v1952, 0.001
  %v2081 = vadd.f32 %v1953, 0.001
  %v2082 = vadd.f32 %v1954, 0.001
  %v2083 = vadd.f32 %v1955, 0.001
  %v2084 = vadd.f32 %v1956, 0.001
  %v2085 = vadd.f32 %v1957, 0.001
  %v2086 = vadd.f32 %v1958, 0.001
  %v2087 = vadd.f32 %v1959, 0.001
  %v2088 = vadd.f32 %v1960, 0.001
  %v2089 = vadd.f32 %v1961, 0.001
  %v2090 = vadd.f32 %v1962, 0.001
  %v2091 = vadd.f32 %v1963, 0.001
  %v2092 = vadd.f32 %v1964, 0.001
  %v2093 = vadd.f32 %v1965, 0.001
  %v2094 = vadd.f32 %v1966, 0.001
  %v2095 = vadd.f32 %v1967, 0.001
  %v2096 = vadd.f32 %v1968, 0.001
  %v2097 = vadd.f32 %v1969, 0.001
  %v2098 = vadd.f32 %v1970, 0.001
  %v2099 = vadd.f32 %v1971, 0.001
  %v2100 = vadd.f32 %v1972, 0.001
  %v2101 = vadd.f32 %v1973, 0.001
  %v2102 = vadd.f32 %v1974, 0.001
  %v2103 = vadd.f32 %v1975, 0.001
  %v2104 = vadd.f32 %v1976, 0.001
  %v2105 = vadd.f32 %v1977, 0.001
  %v2106 = vadd.f32 %v1978, 0.001
  %v2107 = vadd.f32 %v1979, 0.001
  %v2108 = vadd.f32 %v1980, 0.001
  %v2109 = vadd.f32 %v1981, 0.001
  %v2110 = vadd.f32 %v1982, 0.001
  %v2111 = vadd.f32 %v1983, 0.001
  %v2112 = vadd.f32 %v1984, 0.001
  %v2113 = vadd.f32 %v1985, 0.001
  %v2114 = vadd.f32 %v1986, 0.001
  %v2115 = vadd.f32 %v1987, 0.001
  %v2116 = vadd.f32 %v1988, 0.001
  %v2117 = vadd.f32 %v1989, 0.001
  %v2118 = vadd.f32 %v1990, 0.001
  %v2119 = vadd.f32 %v1991, 0.001
  %v2120 = vadd.f32 %v1992, 0.001
  %v2121 = vadd.f32 %v1993, 0.001
  %v2122 = vadd.f32 %v1994, 0.001
  %v2123 = vadd.f32 %v1995, 0.001
  %v2124 = vadd.f32 %v1996, 0.001
  %v2125 = vadd.f32 %v1997, 0.001
  %v2126 = vadd.f32 %v1998, 0.001
  %v2127 = vadd.f32 %v1999, 0.001
  %v2128 = vadd.f32 %v2000, 0.001
  %v2129 = vadd.f32 %v2001, 0.001
  %v2130 = vadd.f32 %v2002, 0.001
  %v2131 = vadd.f32 %v2003, 0.001
  %vm2132 = vcmask 64512
  %2133 = vst.msk [vmem:[%s5] sm:$0xff] %vm2132, %v2004
  %2134 = vst.msk [vmem:[%s5 + $0x8] sm:$0xff] %vm2132, %v2005
  %2135 = vst.msk [vmem:[%s5 + $0x10] sm:$0xff] %vm2132, %v2006
  %2136 = vst.msk [vmem:[%s5 + $0x18] sm:$0xff] %vm2132, %v2007
  %2137 = vst.msk [vmem:[%s5 + $0x20] sm:$0xff] %vm2132, %v2008
  %2138 = vst.msk [vmem:[%s5 + $0x28] sm:$0xff] %vm2132, %v2009
  %2139 = vst.msk [vmem:[%s5 + $0x30] sm:$0xff] %vm2132, %v2010
  %2140 = vst.msk [vmem:[%s5 + $0x38] sm:$0xff] %vm2132, %v2011
  %2141 = vst.msk [vmem:[%s5 + $0x40] sm:$0xff] %vm2132, %v2012
  %2142 = vst.msk [vmem:[%s5 + $0x48] sm:$0xff] %vm2132, %v2013
  %2143 = vst.msk [vmem:[%s5 + $0x50] sm:$0xff] %vm2132, %v2014
  %2144 = vst.msk [vmem:[%s5 + $0x58] sm:$0xff] %vm2132, %v2015
  %2145 = vst.msk [vmem:[%s5 + $0x60] sm:$0xff] %vm2132, %v2016
  %2146 = vst.msk [vmem:[%s5 + $0x68] sm:$0xff] %vm2132, %v2017
  %2147 = vst.msk [vmem:[%s5 + $0x70] sm:$0xff] %vm2132, %v2018
  %2148 = vst.msk [vmem:[%s5 + $0x78] sm:$0xff] %vm2132, %v2019
  %2149 = vst.msk [vmem:[%s5 + $0x80] sm:$0xff] %vm2132, %v2020
  %2150 = vst.msk [vmem:[%s5 + $0x88] sm:$0xff] %vm2132, %v2021
  %2151 = vst.msk [vmem:[%s5 + $0x90] sm:$0xff] %vm2132, %v2022
  %2152 = vst.msk [vmem:[%s5 + $0x98] sm:$0xff] %vm2132, %v2023
  %2153 = vst.msk [vmem:[%s5 + $0xa0] sm:$0xff] %vm2132, %v2024
  %2154 = vst.msk [vmem:[%s5 + $0xa8] sm:$0xff] %vm2132, %v2025
  %2155 = vst.msk [vmem:[%s5 + $0xb0] sm:$0xff] %vm2132, %v2026
  %2156 = vst.msk [vmem:[%s5 + $0xb8] sm:$0xff] %vm2132, %v2027
  %2157 = vst.msk [vmem:[%s5 + $0xc0] sm:$0xff] %vm2132, %v2028
  %2158 = vst.msk [vmem:[%s5 + $0xc8] sm:$0xff] %vm2132, %v2029
  %2159 = vst.msk [vmem:[%s5 + $0xd0] sm:$0xff] %vm2132, %v2030
  %2160 = vst.msk [vmem:[%s5 + $0xd8] sm:$0xff] %vm2132, %v2031
  %2161 = vst.msk [vmem:[%s5 + $0xe0] sm:$0xff] %vm2132, %v2032
  %2162 = vst.msk [vmem:[%s5 + $0xe8] sm:$0xff] %vm2132, %v2033
  %2163 = vst.msk [vmem:[%s5 + $0xf0] sm:$0xff] %vm2132, %v2034
  %2164 = vst.msk [vmem:[%s5 + $0xf8] sm:$0xff] %vm2132, %v2035
  %2165 = vst.msk [vmem:[%s5 + $0x100] sm:$0xff] %vm2132, %v2036
  %2166 = vst.msk [vmem:[%s5 + $0x108] sm:$0xff] %vm2132, %v2037
  %2167 = vst.msk [vmem:[%s5 + $0x110] sm:$0xff] %vm2132, %v2038
  %2168 = vst.msk [vmem:[%s5 + $0x118] sm:$0xff] %vm2132, %v2039
  %2169 = vst.msk [vmem:[%s5 + $0x120] sm:$0xff] %vm2132, %v2040
  %2170 = vst.msk [vmem:[%s5 + $0x128] sm:$0xff] %vm2132, %v2041
  %2171 = vst.msk [vmem:[%s5 + $0x130] sm:$0xff] %vm2132, %v2042
  %2172 = vst.msk [vmem:[%s5 + $0x138] sm:$0xff] %vm2132, %v2043
  %2173 = vst.msk [vmem:[%s5 + $0x140] sm:$0xff] %vm2132, %v2044
  %2174 = vst.msk [vmem:[%s5 + $0x148] sm:$0xff] %vm2132, %v2045
  %2175 = vst.msk [vmem:[%s5 + $0x150] sm:$0xff] %vm2132, %v2046
  %2176 = vst.msk [vmem:[%s5 + $0x158] sm:$0xff] %vm2132, %v2047
  %2177 = vst.msk [vmem:[%s5 + $0x160] sm:$0xff] %vm2132, %v2048
  %2178 = vst.msk [vmem:[%s5 + $0x168] sm:$0xff] %vm2132, %v2049
  %2179 = vst.msk [vmem:[%s5 + $0x170] sm:$0xff] %vm2132, %v2050
  %2180 = vst.msk [vmem:[%s5 + $0x178] sm:$0xff] %vm2132, %v2051
  %2181 = vst.msk [vmem:[%s5 + $0x180] sm:$0xff] %vm2132, %v2052
  %2182 = vst.msk [vmem:[%s5 + $0x188] sm:$0xff] %vm2132, %v2053
  %2183 = vst.msk [vmem:[%s5 + $0x190] sm:$0xff] %vm2132, %v2054
  %2184 = vst.msk [vmem:[%s5 + $0x198] sm:$0xff] %vm2132, %v2055
  %2185 = vst.msk [vmem:[%s5 + $0x1a0] sm:$0xff] %vm2132, %v2056
  %2186 = vst.msk [vmem:[%s5 + $0x1a8] sm:$0xff] %vm2132, %v2057
  %2187 = vst.msk [vmem:[%s5 + $0x1b0] sm:$0xff] %vm2132, %v2058
  %2188 = vst.msk [vmem:[%s5 + $0x1b8] sm:$0xff] %vm2132, %v2059
  %2189 = vst.msk [vmem:[%s5 + $0x1c0] sm:$0xff] %vm2132, %v2060
  %2190 = vst.msk [vmem:[%s5 + $0x1c8] sm:$0xff] %vm2132, %v2061
  %2191 = vst.msk [vmem:[%s5 + $0x1d0] sm:$0xff] %vm2132, %v2062
  %2192 = vst.msk [vmem:[%s5 + $0x1d8] sm:$0xff] %vm2132, %v2063
  %2193 = vst.msk [vmem:[%s5 + $0x1e0] sm:$0xff] %vm2132, %v2064
  %2194 = vst.msk [vmem:[%s5 + $0x1e8] sm:$0xff] %vm2132, %v2065
  %2195 = vst.msk [vmem:[%s5 + $0x1f0] sm:$0xff] %vm2132, %v2066
  %2196 = vst.msk [vmem:[%s5 + $0x1f8] sm:$0xff] %vm2132, %v2067
  %2197 = vst.msk [vmem:[%s5 + $0x200] sm:$0xff] %vm2132, %v2068
  %2198 = vst.msk [vmem:[%s5 + $0x208] sm:$0xff] %vm2132, %v2069
  %2199 = vst.msk [vmem:[%s5 + $0x210] sm:$0xff] %vm2132, %v2070
  %2200 = vst.msk [vmem:[%s5 + $0x218] sm:$0xff] %vm2132, %v2071
  %2201 = vst.msk [vmem:[%s5 + $0x220] sm:$0xff] %vm2132, %v2072
  %2202 = vst.msk [vmem:[%s5 + $0x228] sm:$0xff] %vm2132, %v2073
  %2203 = vst.msk [vmem:[%s5 + $0x230] sm:$0xff] %vm2132, %v2074
  %2204 = vst.msk [vmem:[%s5 + $0x238] sm:$0xff] %vm2132, %v2075
  %2205 = vst.msk [vmem:[%s5 + $0x240] sm:$0xff] %vm2132, %v2076
  %2206 = vst.msk [vmem:[%s5 + $0x248] sm:$0xff] %vm2132, %v2077
  %2207 = vst.msk [vmem:[%s5 + $0x250] sm:$0xff] %vm2132, %v2078
  %2208 = vst.msk [vmem:[%s5 + $0x258] sm:$0xff] %vm2132, %v2079
  %2209 = vst.msk [vmem:[%s5 + $0x260] sm:$0xff] %vm2132, %v2080
  %2210 = vst.msk [vmem:[%s5 + $0x268] sm:$0xff] %vm2132, %v2081
  %2211 = vst.msk [vmem:[%s5 + $0x270] sm:$0xff] %vm2132, %v2082
  %2212 = vst.msk [vmem:[%s5 + $0x278] sm:$0xff] %vm2132, %v2083
  %2213 = vst.msk [vmem:[%s5 + $0x280] sm:$0xff] %vm2132, %v2084
  %2214 = vst.msk [vmem:[%s5 + $0x288] sm:$0xff] %vm2132, %v2085
  %2215 = vst.msk [vmem:[%s5 + $0x290] sm:$0xff] %vm2132, %v2086
  %2216 = vst.msk [vmem:[%s5 + $0x298] sm:$0xff] %vm2132, %v2087
  %2217 = vst.msk [vmem:[%s5 + $0x2a0] sm:$0xff] %vm2132, %v2088
  %2218 = vst.msk [vmem:[%s5 + $0x2a8] sm:$0xff] %vm2132, %v2089
  %2219 = vst.msk [vmem:[%s5 + $0x2b0] sm:$0xff] %vm2132, %v2090
  %2220 = vst.msk [vmem:[%s5 + $0x2b8] sm:$0xff] %vm2132, %v2091
  %2221 = vst.msk [vmem:[%s5 + $0x2c0] sm:$0xff] %vm2132, %v2092
  %2222 = vst.msk [vmem:[%s5 + $0x2c8] sm:$0xff] %vm2132, %v2093
  %2223 = vst.msk [vmem:[%s5 + $0x2d0] sm:$0xff] %vm2132, %v2094
  %2224 = vst.msk [vmem:[%s5 + $0x2d8] sm:$0xff] %vm2132, %v2095
  %2225 = vst.msk [vmem:[%s5 + $0x2e0] sm:$0xff] %vm2132, %v2096
  %2226 = vst.msk [vmem:[%s5 + $0x2e8] sm:$0xff] %vm2132, %v2097
  %2227 = vst.msk [vmem:[%s5 + $0x2f0] sm:$0xff] %vm2132, %v2098
  %2228 = vst.msk [vmem:[%s5 + $0x2f8] sm:$0xff] %vm2132, %v2099
  %2229 = vst.msk [vmem:[%s5 + $0x300] sm:$0xff] %vm2132, %v2100
  %2230 = vst.msk [vmem:[%s5 + $0x308] sm:$0xff] %vm2132, %v2101
  %2231 = vst.msk [vmem:[%s5 + $0x310] sm:$0xff] %vm2132, %v2102
  %2232 = vst.msk [vmem:[%s5 + $0x318] sm:$0xff] %vm2132, %v2103
  %2233 = vst.msk [vmem:[%s5 + $0x320] sm:$0xff] %vm2132, %v2104
  %2234 = vst.msk [vmem:[%s5 + $0x328] sm:$0xff] %vm2132, %v2105
  %2235 = vst.msk [vmem:[%s5 + $0x330] sm:$0xff] %vm2132, %v2106
  %2236 = vst.msk [vmem:[%s5 + $0x338] sm:$0xff] %vm2132, %v2107
  %2237 = vst.msk [vmem:[%s5 + $0x340] sm:$0xff] %vm2132, %v2108
  %2238 = vst.msk [vmem:[%s5 + $0x348] sm:$0xff] %vm2132, %v2109
  %2239 = vst.msk [vmem:[%s5 + $0x350] sm:$0xff] %vm2132, %v2110
  %2240 = vst.msk [vmem:[%s5 + $0x358] sm:$0xff] %vm2132, %v2111
  %2241 = vst.msk [vmem:[%s5 + $0x360] sm:$0xff] %vm2132, %v2112
  %2242 = vst.msk [vmem:[%s5 + $0x368] sm:$0xff] %vm2132, %v2113
  %2243 = vst.msk [vmem:[%s5 + $0x370] sm:$0xff] %vm2132, %v2114
  %2244 = vst.msk [vmem:[%s5 + $0x378] sm:$0xff] %vm2132, %v2115
  %2245 = vst.msk [vmem:[%s5 + $0x380] sm:$0xff] %vm2132, %v2116
  %2246 = vst.msk [vmem:[%s5 + $0x388] sm:$0xff] %vm2132, %v2117
  %2247 = vst.msk [vmem:[%s5 + $0x390] sm:$0xff] %vm2132, %v2118
  %2248 = vst.msk [vmem:[%s5 + $0x398] sm:$0xff] %vm2132, %v2119
  %2249 = vst.msk [vmem:[%s5 + $0x3a0] sm:$0xff] %vm2132, %v2120
  %2250 = vst.msk [vmem:[%s5 + $0x3a8] sm:$0xff] %vm2132, %v2121
  %2251 = vst.msk [vmem:[%s5 + $0x3b0] sm:$0xff] %vm2132, %v2122
  %2252 = vst.msk [vmem:[%s5 + $0x3b8] sm:$0xff] %vm2132, %v2123
  %2253 = vst.msk [vmem:[%s5 + $0x3c0] sm:$0xff] %vm2132, %v2124
  %2254 = vst.msk [vmem:[%s5 + $0x3c8] sm:$0xff] %vm2132, %v2125
  %2255 = vst.msk [vmem:[%s5 + $0x3d0] sm:$0xff] %vm2132, %v2126
  %2256 = vst.msk [vmem:[%s5 + $0x3d8] sm:$0xff] %vm2132, %v2127
  %2257 = vst.msk [vmem:[%s5 + $0x3e0] sm:$0xff] %vm2132, %v2128
  %2258 = vst.msk [vmem:[%s5 + $0x3e8] sm:$0xff] %vm2132, %v2129
  %2259 = vst.msk [vmem:[%s5 + $0x3f0] sm:$0xff] %vm2132, %v2130
  %2260 = vst.msk [vmem:[%s5 + $0x3f8] sm:$0xff] %vm2132, %v2131
  // Predicated region
  $region22: #{tpu_custom_call.1} parent=0 // pred_check
    _
  $region23: #{tpu_custom_call.1} parent=0 // pred_check_branch
    %2262 = sbr.rel (0) target = $region25
  $region24: #{tpu_custom_call.1} parent=0 // pred_region
    _
  $region25: #{tpu_custom_call.1} parent=0 // pred_fallthru
    _
  // Predicated region
  $region26: #{tpu_custom_call.1} parent=0 // pred_check
    _
  $region27: #{tpu_custom_call.1} parent=0 // pred_check_branch
    %2264 = sbr.rel (0) target = $region29
  $region28: #{tpu_custom_call.1} parent=0 // pred_region
    _
  $region29: #{tpu_custom_call.1} parent=0 // pred_fallthru
    _

</llo_original>
